<compile_context>
chip_gen: v7x
topology: tpu7x:2x2x1
jax: 0.10.0
libtpu: 0.0.40
codegen_flags: <defaults>
</compile_context>

<pallas_src>
import functools
import math

import jax
import jax.numpy as jnp
from jax.experimental import pallas as pl
from jax.experimental.pallas import tpu as pltpu

BN_EPS = 1e-5
F = 128                      # every feature dim is padded to this lane width

# Packed BN/bias table row layout, shape (24, 128) f32:
#   layer1 (orig F=64,  shortcut): rows  0..5  = g1, b1, g2, b2, gs, bs
#   layer2 (orig F=128, shortcut): rows  6..11
#   layer3 (orig F=128, identity): rows 12..15 = g1, b1, g2, b2
#   layer4 (orig F=64,  shortcut): rows 16..21
#   row 22: final-FC bias (padded to 128 lanes); row 23: unused
_BN_ROWS = 24

# Weight slab row bands (all bf16, slab shape (768, 256)):
#   rows   0:128  -> wcat1 = [w1_layer1 | ws_layer1]   (input rows 7..127 zero)
#   rows 128:256  -> wcat2 = [w1_layer2 | ws_layer2]   (input rows 64..127 zero)
#   rows 256:384  -> wcat4 = [w1_layer4 | ws_layer4]
#   rows 384:512  -> [w2_layer1 | w2_layer2]
#   rows 512:640  -> [w1_layer3 | w2_layer3]
#   rows 640:768  -> [w2_layer4 | w_fc (cols 5..127 zero)]
_WSLAB_SHAPE = (768, 256)


# ---------------------------------------------------------------------------
# Fused Pallas kernel (single invocation, everything resident in VMEM)
# ---------------------------------------------------------------------------
def fused_resnet_kernel(x_ref, w_ref, bn_ref, out_ref):
    x = x_ref[...]                     # (B, 128) f32, lanes >= input_size are zero
    bn = bn_ref[...]                   # (24, 128) f32

    def brow(r):
        return bn[r:r + 1, :]          # (1, 128)

    def bnorm(h, r_gamma):
        # Training-mode BatchNorm1d: batch mean, biased batch variance, eps=1e-5.
        # Centered two-pass stats; application is a single FMA-style pass.
        gamma = brow(r_gamma)
        beta = brow(r_gamma + 1)
        inv_n = 1.0 / h.shape[0]
        mean = jnp.sum(h, axis=0, keepdims=True) * inv_n
        d = h - mean
        var = jnp.sum(d * d, axis=0, keepdims=True) * inv_n
        s = gamma * jax.lax.rsqrt(var + BN_EPS)
        # NOTE: at large batch the two axis-0 reductions could be moved onto the MXU
        # (ones-row matmuls) to relieve the VPU; unnecessary at this scale.
        return d * s + beta

    def mm(a, w):
        # bf16 operands, f32 accumulation on the MXU.
        return jnp.dot(a.astype(jnp.bfloat16), w, preferred_element_type=jnp.float32)

    def shortcut_block(h_in, wcat, w2, r0):
        hh = mm(h_in, wcat)                               # (B, 256): [main | shortcut]
        main, sc = hh[:, :F], hh[:, F:]
        out = jnp.maximum(bnorm(main, r0), 0.0)
        out = bnorm(mm(out, w2), r0 + 2)
        sc = bnorm(sc, r0 + 4)
        return jnp.maximum(out + sc, 0.0)

    def identity_block(h_in, w1, w2, r0):
        out = jnp.maximum(bnorm(mm(h_in, w1), r0), 0.0)
        out = bnorm(mm(out, w2), r0 + 2)
        return jnp.maximum(out + h_in, 0.0)

    # Static, tile-aligned slices of the packed weight slab.
    wcat1 = w_ref[0:128, :]
    wcat2 = w_ref[128:256, :]
    wcat4 = w_ref[256:384, :]
    w2_1 = w_ref[384:512, 0:128]
    w2_2 = w_ref[384:512, 128:256]
    w1_3 = w_ref[512:640, 0:128]
    w2_3 = w_ref[512:640, 128:256]
    w2_4 = w_ref[640:768, 0:128]
    wfc = w_ref[640:768, 128:256]

    h = shortcut_block(x, wcat1, w2_1, 0)     # layer1:   7 ->  64 (padded to 128)
    h = shortcut_block(h, wcat2, w2_2, 6)     # layer2:  64 -> 128
    h = identity_block(h, w1_3, w2_3, 12)     # layer3: 128 -> 128
    h = shortcut_block(h, wcat4, w2_4, 16)    # layer4: 128 ->  64 (padded to 128)

    out_ref[...] = mm(h, wfc) + brow(22)      # final FC, lane-dense (B, 128) store


# ---------------------------------------------------------------------------
# Wrapper around the single fused pallas_call
# ---------------------------------------------------------------------------
_VMEM_SPEC = pl.BlockSpec(memory_space=pltpu.MemorySpace.VMEM)


@functools.partial(jax.jit, static_argnames=("num_classes",))
def resnet_tabular_forward(x, params, num_classes=5):
    # x.squeeze(0) in the PyTorch forward is a no-op for batch > 1.
    batch, in_f = x.shape
    x_pad = jnp.zeros((batch, F), jnp.float32).at[:, :in_f].set(x.astype(jnp.float32))

    wslab = params["wslab"]
    bnpack = params["bnpack"]

    # Advisory cost estimate: 3 (128,256) + 6 (128,128) matmuls, 11 BN rsqrt rows.
    flops = 2 * batch * (3 * 128 * 256 + 6 * 128 * 128)
    transcendentals = 11 * F
    bytes_accessed = (x_pad.size * 4 + wslab.size * 2 + bnpack.size * 4
                      + batch * F * 4)

    out = pl.pallas_call(
        fused_resnet_kernel,
        out_shape=jax.ShapeDtypeStruct((batch, F), jnp.float32),
        in_specs=[_VMEM_SPEC, _VMEM_SPEC, _VMEM_SPEC],
        out_specs=_VMEM_SPEC,
        compiler_params=pltpu.CompilerParams(
            # Modest, generation-safe scoped-VMEM limit (well under v7x's 64 MiB/TC);
            # plenty for the ~0.4 MiB of weights plus the resident batch tiles.
            vmem_limit_bytes=32 * 1024 * 1024,
        ),
        cost_estimate=pl.CostEstimate(
            flops=flops,
            transcendentals=transcendentals,
            bytes_accessed=bytes_accessed,
        ),
    )(x_pad, wslab, bnpack)

    return out[:, :num_classes]


# ---------------------------------------------------------------------------
# Deterministic parameter initialization (matches module __init__ semantics)
# ---------------------------------------------------------------------------
def _kaiming(key, fan_in, fan_out):
    # kaiming_normal_(nonlinearity='relu'), fan_in mode: std = sqrt(2 / fan_in).
    # Stored as (in, out), i.e. the transpose of PyTorch's (out, in).
    std = math.sqrt(2.0 / fan_in)
    return jax.random.normal(key, (fan_in, fan_out), jnp.float32) * std


def _pad(w, rows, cols):
    return jnp.zeros((rows, cols), jnp.float32).at[:w.shape[0], :w.shape[1]].set(w)


def init_resnet_tabular(key, input_size=7, num_classes=5):
    ks = jax.random.split(key, 12)

    # layer1: input_size -> 64 (shortcut); layer2: 64 -> 128 (shortcut)
    # layer3: 128 -> 128 (identity);       layer4: 128 -> 64 (shortcut)
    w1_1 = _kaiming(ks[0], input_size, 64)
    ws_1 = _kaiming(ks[1], input_size, 64)
    w2_1 = _kaiming(ks[2], 64, 64)

    w1_2 = _kaiming(ks[3], 64, 128)
    ws_2 = _kaiming(ks[4], 64, 128)
    w2_2 = _kaiming(ks[5], 128, 128)

    w1_3 = _kaiming(ks[6], 128, 128)
    w2_3 = _kaiming(ks[7], 128, 128)

    w1_4 = _kaiming(ks[8], 128, 64)
    ws_4 = _kaiming(ks[9], 128, 64)
    w2_4 = _kaiming(ks[10], 64, 64)

    wfc = _kaiming(ks[11], 64, num_classes)
    bfc = jnp.zeros((num_classes,), jnp.float32)

    # Pre-BN Linear biases are dropped: training-mode BN subtracts the batch mean,
    # which cancels them exactly (PyTorch also initialises them to zero).

    # Padded, concatenated weight bands (128 lanes per feature dim, zeros elsewhere).
    wcat1 = jnp.concatenate([_pad(w1_1, F, F), _pad(ws_1, F, F)], axis=1)   # (128, 256)
    wcat2 = jnp.concatenate([_pad(w1_2, F, F), _pad(ws_2, F, F)], axis=1)   # (128, 256)
    wcat4 = jnp.concatenate([_pad(w1_4, F, F), _pad(ws_4, F, F)], axis=1)   # (128, 256)
    band_w2_12 = jnp.concatenate([_pad(w2_1, F, F), w2_2], axis=1)          # (128, 256)
    band_l3 = jnp.concatenate([w1_3, w2_3], axis=1)                         # (128, 256)
    band_tail = jnp.concatenate([_pad(w2_4, F, F), _pad(wfc, F, F)], axis=1)

    wslab = jnp.concatenate(
        [wcat1, wcat2, wcat4, band_w2_12, band_l3, band_tail], axis=0
    ).astype(jnp.bfloat16)
    assert wslab.shape == _WSLAB_SHAPE, wslab.shape

    # BN gamma/beta pack + final-FC bias.  gamma = 1 on real lanes, 0 on pad lanes
    # (keeps padded lanes exactly zero); beta = 0 everywhere.
    bnpack = jnp.zeros((_BN_ROWS, F), jnp.float32)
    gamma_rows_f128 = jnp.array([6, 8, 10, 12, 14], dtype=jnp.int32)
    gamma_rows_f64 = jnp.array([0, 2, 4, 16, 18, 20], dtype=jnp.int32)
    bnpack = bnpack.at[gamma_rows_f128, :].set(1.0)
    bnpack = bnpack.at[gamma_rows_f64, :64].set(1.0)
    bnpack = bnpack.at[22, :num_classes].set(bfc)

    return {"wslab": wslab, "bnpack": bnpack}


# ---------------------------------------------------------------------------
# Pure-JAX reference (same packed params, same bf16 matmul operands)
# ---------------------------------------------------------------------------
def _reference_forward(x, params, num_classes=5):
    w = params["wslab"]
    bn = params["bnpack"]

    def mm(a, wm):
        return jnp.dot(a.astype(jnp.bfloat16), wm, preferred_element_type=jnp.float32)

    def bnorm(h, r):
        gamma, beta = bn[r:r + 1, :], bn[r + 1:r + 2, :]
        mean = jnp.mean(h, axis=0, keepdims=True)
        var = jnp.mean((h - mean) ** 2, axis=0, keepdims=True)
        return (h - mean) * (gamma * jax.lax.rsqrt(var + BN_EPS)) + beta

    def sc_block(h, wcat, w2, r0):
        hh = mm(h, wcat)
        main, s = hh[:, :F], hh[:, F:]
        o = jax.nn.relu(bnorm(main, r0))
        o = bnorm(mm(o, w2), r0 + 2)
        s = bnorm(s, r0 + 4)
        return jax.nn.relu(o + s)

    def id_block(h, w1, w2, r0):
        o = jax.nn.relu(bnorm(mm(h, w1), r0))
        o = bnorm(mm(o, w2), r0 + 2)
        return jax.nn.relu(o + h)

    batch, in_f = x.shape
    h = jnp.zeros((batch, F), jnp.float32).at[:, :in_f].set(x)
    h = sc_block(h, w[0:128], w[384:512, 0:128], 0)
    h = sc_block(h, w[128:256], w[384:512, 128:256], 6)
    h = id_block(h, w[512:640, 0:128], w[512:640, 128:256], 12)
    h = sc_block(h, w[256:384], w[640:768, 0:128], 16)
    out = mm(h, w[640:768, 128:256]) + bn[22:23, :]
    return out[:, :num_classes]


if __name__ == "__main__":
    key = jax.random.PRNGKey(0)
    pkey, xkey = jax.random.split(key)

    input_size, num_classes, batch = 7, 5, 8
    params = init_resnet_tabular(pkey, input_size, num_classes)
    x = jax.random.normal(xkey, (batch, input_size), jnp.float32)

    out = resnet_tabular_forward(x, params, num_classes=num_classes)
    out = jax.block_until_ready(out)

    assert out.shape == (batch, num_classes), out.shape
    assert out.dtype == jnp.float32

    ref = _reference_forward(x, params, num_classes)
    max_err = float(jnp.max(jnp.abs(out - ref)))
    assert jnp.allclose(out, ref, atol=2e-2, rtol=2e-2), max_err

    print("KERNEL_OK")
</pallas_src>

<mosaic_0001>
module attributes {stable_mosaic.version = 11 : i64} {
  func.func @fused_resnet_kernel(%arg0: memref<8x128xf32, #tpu.memory_space<vmem>>, %arg1: memref<768x256xbf16, #tpu.memory_space<vmem>>, %arg2: memref<24x128xf32, #tpu.memory_space<vmem>>, %arg3: memref<8x128xf32, #tpu.memory_space<vmem>>) attributes {dimension_semantics = [], scalar_prefetch = 0 : i64, scratch_operands = 0 : i64, tpu.core_type = #tpu.core_type<tc>} {
    %c0 = arith.constant 0 : index
    %c0_0 = arith.constant 0 : index
    %0 = vector.load %arg0[%c0, %c0_0] : memref<8x128xf32, #tpu.memory_space<vmem>>, vector<8x128xf32>
    %c0_1 = arith.constant 0 : index
    %c0_2 = arith.constant 0 : index
    %1 = vector.load %arg2[%c0_1, %c0_2] : memref<24x128xf32, #tpu.memory_space<vmem>>, vector<24x128xf32>
    %c0_3 = arith.constant 0 : index
    %c0_4 = arith.constant 0 : index
    %2 = vector.load %arg1[%c0_3, %c0_4] : memref<768x256xbf16, #tpu.memory_space<vmem>>, vector<128x256xbf16>
    %c128 = arith.constant 128 : index
    %c0_5 = arith.constant 0 : index
    %3 = vector.load %arg1[%c128, %c0_5] : memref<768x256xbf16, #tpu.memory_space<vmem>>, vector<128x256xbf16>
    %c256 = arith.constant 256 : index
    %c0_6 = arith.constant 0 : index
    %4 = vector.load %arg1[%c256, %c0_6] : memref<768x256xbf16, #tpu.memory_space<vmem>>, vector<128x256xbf16>
    %c384 = arith.constant 384 : index
    %c0_7 = arith.constant 0 : index
    %5 = vector.load %arg1[%c384, %c0_7] : memref<768x256xbf16, #tpu.memory_space<vmem>>, vector<128x128xbf16>
    %c384_8 = arith.constant 384 : index
    %c128_9 = arith.constant 128 : index
    %6 = vector.load %arg1[%c384_8, %c128_9] : memref<768x256xbf16, #tpu.memory_space<vmem>>, vector<128x128xbf16>
    %c512 = arith.constant 512 : index
    %c0_10 = arith.constant 0 : index
    %7 = vector.load %arg1[%c512, %c0_10] : memref<768x256xbf16, #tpu.memory_space<vmem>>, vector<128x128xbf16>
    %c512_11 = arith.constant 512 : index
    %c128_12 = arith.constant 128 : index
    %8 = vector.load %arg1[%c512_11, %c128_12] : memref<768x256xbf16, #tpu.memory_space<vmem>>, vector<128x128xbf16>
    %c640 = arith.constant 640 : index
    %c0_13 = arith.constant 0 : index
    %9 = vector.load %arg1[%c640, %c0_13] : memref<768x256xbf16, #tpu.memory_space<vmem>>, vector<128x128xbf16>
    %c640_14 = arith.constant 640 : index
    %c128_15 = arith.constant 128 : index
    %10 = vector.load %arg1[%c640_14, %c128_15] : memref<768x256xbf16, #tpu.memory_space<vmem>>, vector<128x128xbf16>
    %11 = arith.truncf %0 : vector<8x128xf32> to vector<8x128xbf16>
    %cst = arith.constant dense<0.000000e+00> : vector<8x256xf32>
    %12 = tpu.matmul %11, %2, %cst {dimension_numbers = #tpu.dot_dimension_numbers<[1], [0], [0], [1], [0, 0, 1, 1], [], []>} : vector<8x128xbf16>, vector<128x256xbf16>, vector<8x256xf32> -> vector<8x256xf32>
    %13 = vector.extract_strided_slice %12 {offsets = [0, 0], sizes = [8, 128], strides = [1, 1]} : vector<8x256xf32> to vector<8x128xf32>
    %14 = vector.extract_strided_slice %12 {offsets = [0, 128], sizes = [8, 128], strides = [1, 1]} : vector<8x256xf32> to vector<8x128xf32>
    %15 = vector.extract_strided_slice %1 {offsets = [0, 0], sizes = [1, 128], strides = [1, 1]} : vector<24x128xf32> to vector<1x128xf32>
    %16 = vector.extract_strided_slice %1 {offsets = [1, 0], sizes = [1, 128], strides = [1, 1]} : vector<24x128xf32> to vector<1x128xf32>
    %cst_16 = arith.constant dense<0.000000e+00> : vector<128xf32>
    %17 = vector.multi_reduction <add>, %13, %cst_16 [0] : vector<8x128xf32> to vector<128xf32>
    %18 = vector.shape_cast %17 : vector<128xf32> to vector<1x128xf32>
    %cst_17 = arith.constant 1.250000e-01 : f32
    %19 = vector.broadcast %cst_17 : f32 to vector<1x128xf32>
    %20 = arith.mulf %18, %19 : vector<1x128xf32>
    %21 = vector.broadcast %20 : vector<1x128xf32> to vector<8x128xf32>
    %22 = arith.subf %13, %21 : vector<8x128xf32>
    %23 = arith.mulf %22, %22 : vector<8x128xf32>
    %cst_18 = arith.constant dense<0.000000e+00> : vector<128xf32>
    %24 = vector.multi_reduction <add>, %23, %cst_18 [0] : vector<8x128xf32> to vector<128xf32>
    %25 = vector.shape_cast %24 : vector<128xf32> to vector<1x128xf32>
    %cst_19 = arith.constant 1.250000e-01 : f32
    %26 = vector.broadcast %cst_19 : f32 to vector<1x128xf32>
    %27 = arith.mulf %25, %26 : vector<1x128xf32>
    %cst_20 = arith.constant 9.99999974E-6 : f32
    %28 = vector.broadcast %cst_20 : f32 to vector<1x128xf32>
    %29 = arith.addf %27, %28 : vector<1x128xf32>
    %30 = math.rsqrt %29 : vector<1x128xf32>
    %31 = arith.mulf %15, %30 : vector<1x128xf32>
    %32 = vector.broadcast %31 : vector<1x128xf32> to vector<8x128xf32>
    %33 = arith.mulf %22, %32 : vector<8x128xf32>
    %34 = vector.broadcast %16 : vector<1x128xf32> to vector<8x128xf32>
    %35 = arith.addf %33, %34 : vector<8x128xf32>
    %cst_21 = arith.constant 0.000000e+00 : f32
    %36 = vector.broadcast %cst_21 : f32 to vector<8x128xf32>
    %37 = arith.maximumf %35, %36 : vector<8x128xf32>
    %38 = arith.truncf %37 : vector<8x128xf32> to vector<8x128xbf16>
    %cst_22 = arith.constant dense<0.000000e+00> : vector<8x128xf32>
    %39 = tpu.matmul %38, %5, %cst_22 {dimension_numbers = #tpu.dot_dimension_numbers<[1], [0], [0], [1], [0, 0, 1, 1], [], []>} : vector<8x128xbf16>, vector<128x128xbf16>, vector<8x128xf32> -> vector<8x128xf32>
    %40 = vector.extract_strided_slice %1 {offsets = [2, 0], sizes = [1, 128], strides = [1, 1]} : vector<24x128xf32> to vector<1x128xf32>
    %41 = vector.extract_strided_slice %1 {offsets = [3, 0], sizes = [1, 128], strides = [1, 1]} : vector<24x128xf32> to vector<1x128xf32>
    %cst_23 = arith.constant dense<0.000000e+00> : vector<128xf32>
    %42 = vector.multi_reduction <add>, %39, %cst_23 [0] : vector<8x128xf32> to vector<128xf32>
    %43 = vector.shape_cast %42 : vector<128xf32> to vector<1x128xf32>
    %cst_24 = arith.constant 1.250000e-01 : f32
    %44 = vector.broadcast %cst_24 : f32 to vector<1x128xf32>
    %45 = arith.mulf %43, %44 : vector<1x128xf32>
    %46 = vector.broadcast %45 : vector<1x128xf32> to vector<8x128xf32>
    %47 = arith.subf %39, %46 : vector<8x128xf32>
    %48 = arith.mulf %47, %47 : vector<8x128xf32>
    %cst_25 = arith.constant dense<0.000000e+00> : vector<128xf32>
    %49 = vector.multi_reduction <add>, %48, %cst_25 [0] : vector<8x128xf32> to vector<128xf32>
    %50 = vector.shape_cast %49 : vector<128xf32> to vector<1x128xf32>
    %cst_26 = arith.constant 1.250000e-01 : f32
    %51 = vector.broadcast %cst_26 : f32 to vector<1x128xf32>
    %52 = arith.mulf %50, %51 : vector<1x128xf32>
    %cst_27 = arith.constant 9.99999974E-6 : f32
    %53 = vector.broadcast %cst_27 : f32 to vector<1x128xf32>
    %54 = arith.addf %52, %53 : vector<1x128xf32>
    %55 = math.rsqrt %54 : vector<1x128xf32>
    %56 = arith.mulf %40, %55 : vector<1x128xf32>
    %57 = vector.broadcast %56 : vector<1x128xf32> to vector<8x128xf32>
    %58 = arith.mulf %47, %57 : vector<8x128xf32>
    %59 = vector.broadcast %41 : vector<1x128xf32> to vector<8x128xf32>
    %60 = arith.addf %58, %59 : vector<8x128xf32>
    %61 = vector.extract_strided_slice %1 {offsets = [4, 0], sizes = [1, 128], strides = [1, 1]} : vector<24x128xf32> to vector<1x128xf32>
    %62 = vector.extract_strided_slice %1 {offsets = [5, 0], sizes = [1, 128], strides = [1, 1]} : vector<24x128xf32> to vector<1x128xf32>
    %cst_28 = arith.constant dense<0.000000e+00> : vector<128xf32>
    %63 = vector.multi_reduction <add>, %14, %cst_28 [0] : vector<8x128xf32> to vector<128xf32>
    %64 = vector.shape_cast %63 : vector<128xf32> to vector<1x128xf32>
    %cst_29 = arith.constant 1.250000e-01 : f32
    %65 = vector.broadcast %cst_29 : f32 to vector<1x128xf32>
    %66 = arith.mulf %64, %65 : vector<1x128xf32>
    %67 = vector.broadcast %66 : vector<1x128xf32> to vector<8x128xf32>
    %68 = arith.subf %14, %67 : vector<8x128xf32>
    %69 = arith.mulf %68, %68 : vector<8x128xf32>
    %cst_30 = arith.constant dense<0.000000e+00> : vector<128xf32>
    %70 = vector.multi_reduction <add>, %69, %cst_30 [0] : vector<8x128xf32> to vector<128xf32>
    %71 = vector.shape_cast %70 : vector<128xf32> to vector<1x128xf32>
    %cst_31 = arith.constant 1.250000e-01 : f32
    %72 = vector.broadcast %cst_31 : f32 to vector<1x128xf32>
    %73 = arith.mulf %71, %72 : vector<1x128xf32>
    %cst_32 = arith.constant 9.99999974E-6 : f32
    %74 = vector.broadcast %cst_32 : f32 to vector<1x128xf32>
    %75 = arith.addf %73, %74 : vector<1x128xf32>
    %76 = math.rsqrt %75 : vector<1x128xf32>
    %77 = arith.mulf %61, %76 : vector<1x128xf32>
    %78 = vector.broadcast %77 : vector<1x128xf32> to vector<8x128xf32>
    %79 = arith.mulf %68, %78 : vector<8x128xf32>
    %80 = vector.broadcast %62 : vector<1x128xf32> to vector<8x128xf32>
    %81 = arith.addf %79, %80 : vector<8x128xf32>
    %82 = arith.addf %60, %81 : vector<8x128xf32>
    %cst_33 = arith.constant 0.000000e+00 : f32
    %83 = vector.broadcast %cst_33 : f32 to vector<8x128xf32>
    %84 = arith.maximumf %82, %83 : vector<8x128xf32>
    %85 = arith.truncf %84 : vector<8x128xf32> to vector<8x128xbf16>
    %cst_34 = arith.constant dense<0.000000e+00> : vector<8x256xf32>
    %86 = tpu.matmul %85, %3, %cst_34 {dimension_numbers = #tpu.dot_dimension_numbers<[1], [0], [0], [1], [0, 0, 1, 1], [], []>} : vector<8x128xbf16>, vector<128x256xbf16>, vector<8x256xf32> -> vector<8x256xf32>
    %87 = vector.extract_strided_slice %86 {offsets = [0, 0], sizes = [8, 128], strides = [1, 1]} : vector<8x256xf32> to vector<8x128xf32>
    %88 = vector.extract_strided_slice %86 {offsets = [0, 128], sizes = [8, 128], strides = [1, 1]} : vector<8x256xf32> to vector<8x128xf32>
    %89 = vector.extract_strided_slice %1 {offsets = [6, 0], sizes = [1, 128], strides = [1, 1]} : vector<24x128xf32> to vector<1x128xf32>
    %90 = vector.extract_strided_slice %1 {offsets = [7, 0], sizes = [1, 128], strides = [1, 1]} : vector<24x128xf32> to vector<1x128xf32>
    %cst_35 = arith.constant dense<0.000000e+00> : vector<128xf32>
    %91 = vector.multi_reduction <add>, %87, %cst_35 [0] : vector<8x128xf32> to vector<128xf32>
    %92 = vector.shape_cast %91 : vector<128xf32> to vector<1x128xf32>
    %cst_36 = arith.constant 1.250000e-01 : f32
    %93 = vector.broadcast %cst_36 : f32 to vector<1x128xf32>
    %94 = arith.mulf %92, %93 : vector<1x128xf32>
    %95 = vector.broadcast %94 : vector<1x128xf32> to vector<8x128xf32>
    %96 = arith.subf %87, %95 : vector<8x128xf32>
    %97 = arith.mulf %96, %96 : vector<8x128xf32>
    %cst_37 = arith.constant dense<0.000000e+00> : vector<128xf32>
    %98 = vector.multi_reduction <add>, %97, %cst_37 [0] : vector<8x128xf32> to vector<128xf32>
    %99 = vector.shape_cast %98 : vector<128xf32> to vector<1x128xf32>
    %cst_38 = arith.constant 1.250000e-01 : f32
    %100 = vector.broadcast %cst_38 : f32 to vector<1x128xf32>
    %101 = arith.mulf %99, %100 : vector<1x128xf32>
    %cst_39 = arith.constant 9.99999974E-6 : f32
    %102 = vector.broadcast %cst_39 : f32 to vector<1x128xf32>
    %103 = arith.addf %101, %102 : vector<1x128xf32>
    %104 = math.rsqrt %103 : vector<1x128xf32>
    %105 = arith.mulf %89, %104 : vector<1x128xf32>
    %106 = vector.broadcast %105 : vector<1x128xf32> to vector<8x128xf32>
    %107 = arith.mulf %96, %106 : vector<8x128xf32>
    %108 = vector.broadcast %90 : vector<1x128xf32> to vector<8x128xf32>
    %109 = arith.addf %107, %108 : vector<8x128xf32>
    %cst_40 = arith.constant 0.000000e+00 : f32
    %110 = vector.broadcast %cst_40 : f32 to vector<8x128xf32>
    %111 = arith.maximumf %109, %110 : vector<8x128xf32>
    %112 = arith.truncf %111 : vector<8x128xf32> to vector<8x128xbf16>
    %cst_41 = arith.constant dense<0.000000e+00> : vector<8x128xf32>
    %113 = tpu.matmul %112, %6, %cst_41 {dimension_numbers = #tpu.dot_dimension_numbers<[1], [0], [0], [1], [0, 0, 1, 1], [], []>} : vector<8x128xbf16>, vector<128x128xbf16>, vector<8x128xf32> -> vector<8x128xf32>
    %114 = vector.extract_strided_slice %1 {offsets = [8, 0], sizes = [1, 128], strides = [1, 1]} : vector<24x128xf32> to vector<1x128xf32>
    %115 = vector.extract_strided_slice %1 {offsets = [9, 0], sizes = [1, 128], strides = [1, 1]} : vector<24x128xf32> to vector<1x128xf32>
    %cst_42 = arith.constant dense<0.000000e+00> : vector<128xf32>
    %116 = vector.multi_reduction <add>, %113, %cst_42 [0] : vector<8x128xf32> to vector<128xf32>
    %117 = vector.shape_cast %116 : vector<128xf32> to vector<1x128xf32>
    %cst_43 = arith.constant 1.250000e-01 : f32
    %118 = vector.broadcast %cst_43 : f32 to vector<1x128xf32>
    %119 = arith.mulf %117, %118 : vector<1x128xf32>
    %120 = vector.broadcast %119 : vector<1x128xf32> to vector<8x128xf32>
    %121 = arith.subf %113, %120 : vector<8x128xf32>
    %122 = arith.mulf %121, %121 : vector<8x128xf32>
    %cst_44 = arith.constant dense<0.000000e+00> : vector<128xf32>
    %123 = vector.multi_reduction <add>, %122, %cst_44 [0] : vector<8x128xf32> to vector<128xf32>
    %124 = vector.shape_cast %123 : vector<128xf32> to vector<1x128xf32>
    %cst_45 = arith.constant 1.250000e-01 : f32
    %125 = vector.broadcast %cst_45 : f32 to vector<1x128xf32>
    %126 = arith.mulf %124, %125 : vector<1x128xf32>
    %cst_46 = arith.constant 9.99999974E-6 : f32
    %127 = vector.broadcast %cst_46 : f32 to vector<1x128xf32>
    %128 = arith.addf %126, %127 : vector<1x128xf32>
    %129 = math.rsqrt %128 : vector<1x128xf32>
    %130 = arith.mulf %114, %129 : vector<1x128xf32>
    %131 = vector.broadcast %130 : vector<1x128xf32> to vector<8x128xf32>
    %132 = arith.mulf %121, %131 : vector<8x128xf32>
    %133 = vector.broadcast %115 : vector<1x128xf32> to vector<8x128xf32>
    %134 = arith.addf %132, %133 : vector<8x128xf32>
    %135 = vector.extract_strided_slice %1 {offsets = [10, 0], sizes = [1, 128], strides = [1, 1]} : vector<24x128xf32> to vector<1x128xf32>
    %136 = vector.extract_strided_slice %1 {offsets = [11, 0], sizes = [1, 128], strides = [1, 1]} : vector<24x128xf32> to vector<1x128xf32>
    %cst_47 = arith.constant dense<0.000000e+00> : vector<128xf32>
    %137 = vector.multi_reduction <add>, %88, %cst_47 [0] : vector<8x128xf32> to vector<128xf32>
    %138 = vector.shape_cast %137 : vector<128xf32> to vector<1x128xf32>
    %cst_48 = arith.constant 1.250000e-01 : f32
    %139 = vector.broadcast %cst_48 : f32 to vector<1x128xf32>
    %140 = arith.mulf %138, %139 : vector<1x128xf32>
    %141 = vector.broadcast %140 : vector<1x128xf32> to vector<8x128xf32>
    %142 = arith.subf %88, %141 : vector<8x128xf32>
    %143 = arith.mulf %142, %142 : vector<8x128xf32>
    %cst_49 = arith.constant dense<0.000000e+00> : vector<128xf32>
    %144 = vector.multi_reduction <add>, %143, %cst_49 [0] : vector<8x128xf32> to vector<128xf32>
    %145 = vector.shape_cast %144 : vector<128xf32> to vector<1x128xf32>
    %cst_50 = arith.constant 1.250000e-01 : f32
    %146 = vector.broadcast %cst_50 : f32 to vector<1x128xf32>
    %147 = arith.mulf %145, %146 : vector<1x128xf32>
    %cst_51 = arith.constant 9.99999974E-6 : f32
    %148 = vector.broadcast %cst_51 : f32 to vector<1x128xf32>
    %149 = arith.addf %147, %148 : vector<1x128xf32>
    %150 = math.rsqrt %149 : vector<1x128xf32>
    %151 = arith.mulf %135, %150 : vector<1x128xf32>
    %152 = vector.broadcast %151 : vector<1x128xf32> to vector<8x128xf32>
    %153 = arith.mulf %142, %152 : vector<8x128xf32>
    %154 = vector.broadcast %136 : vector<1x128xf32> to vector<8x128xf32>
    %155 = arith.addf %153, %154 : vector<8x128xf32>
    %156 = arith.addf %134, %155 : vector<8x128xf32>
    %cst_52 = arith.constant 0.000000e+00 : f32
    %157 = vector.broadcast %cst_52 : f32 to vector<8x128xf32>
    %158 = arith.maximumf %156, %157 : vector<8x128xf32>
    %159 = arith.truncf %158 : vector<8x128xf32> to vector<8x128xbf16>
    %cst_53 = arith.constant dense<0.000000e+00> : vector<8x128xf32>
    %160 = tpu.matmul %159, %7, %cst_53 {dimension_numbers = #tpu.dot_dimension_numbers<[1], [0], [0], [1], [0, 0, 1, 1], [], []>} : vector<8x128xbf16>, vector<128x128xbf16>, vector<8x128xf32> -> vector<8x128xf32>
    %161 = vector.extract_strided_slice %1 {offsets = [12, 0], sizes = [1, 128], strides = [1, 1]} : vector<24x128xf32> to vector<1x128xf32>
    %162 = vector.extract_strided_slice %1 {offsets = [13, 0], sizes = [1, 128], strides = [1, 1]} : vector<24x128xf32> to vector<1x128xf32>
    %cst_54 = arith.constant dense<0.000000e+00> : vector<128xf32>
    %163 = vector.multi_reduction <add>, %160, %cst_54 [0] : vector<8x128xf32> to vector<128xf32>
    %164 = vector.shape_cast %163 : vector<128xf32> to vector<1x128xf32>
    %cst_55 = arith.constant 1.250000e-01 : f32
    %165 = vector.broadcast %cst_55 : f32 to vector<1x128xf32>
    %166 = arith.mulf %164, %165 : vector<1x128xf32>
    %167 = vector.broadcast %166 : vector<1x128xf32> to vector<8x128xf32>
    %168 = arith.subf %160, %167 : vector<8x128xf32>
    %169 = arith.mulf %168, %168 : vector<8x128xf32>
    %cst_56 = arith.constant dense<0.000000e+00> : vector<128xf32>
    %170 = vector.multi_reduction <add>, %169, %cst_56 [0] : vector<8x128xf32> to vector<128xf32>
    %171 = vector.shape_cast %170 : vector<128xf32> to vector<1x128xf32>
    %cst_57 = arith.constant 1.250000e-01 : f32
    %172 = vector.broadcast %cst_57 : f32 to vector<1x128xf32>
    %173 = arith.mulf %171, %172 : vector<1x128xf32>
    %cst_58 = arith.constant 9.99999974E-6 : f32
    %174 = vector.broadcast %cst_58 : f32 to vector<1x128xf32>
    %175 = arith.addf %173, %174 : vector<1x128xf32>
    %176 = math.rsqrt %175 : vector<1x128xf32>
    %177 = arith.mulf %161, %176 : vector<1x128xf32>
    %178 = vector.broadcast %177 : vector<1x128xf32> to vector<8x128xf32>
    %179 = arith.mulf %168, %178 : vector<8x128xf32>
    %180 = vector.broadcast %162 : vector<1x128xf32> to vector<8x128xf32>
    %181 = arith.addf %179, %180 : vector<8x128xf32>
    %cst_59 = arith.constant 0.000000e+00 : f32
    %182 = vector.broadcast %cst_59 : f32 to vector<8x128xf32>
    %183 = arith.maximumf %181, %182 : vector<8x128xf32>
    %184 = arith.truncf %183 : vector<8x128xf32> to vector<8x128xbf16>
    %cst_60 = arith.constant dense<0.000000e+00> : vector<8x128xf32>
    %185 = tpu.matmul %184, %8, %cst_60 {dimension_numbers = #tpu.dot_dimension_numbers<[1], [0], [0], [1], [0, 0, 1, 1], [], []>} : vector<8x128xbf16>, vector<128x128xbf16>, vector<8x128xf32> -> vector<8x128xf32>
    %186 = vector.extract_strided_slice %1 {offsets = [14, 0], sizes = [1, 128], strides = [1, 1]} : vector<24x128xf32> to vector<1x128xf32>
    %187 = vector.extract_strided_slice %1 {offsets = [15, 0], sizes = [1, 128], strides = [1, 1]} : vector<24x128xf32> to vector<1x128xf32>
    %cst_61 = arith.constant dense<0.000000e+00> : vector<128xf32>
    %188 = vector.multi_reduction <add>, %185, %cst_61 [0] : vector<8x128xf32> to vector<128xf32>
    %189 = vector.shape_cast %188 : vector<128xf32> to vector<1x128xf32>
    %cst_62 = arith.constant 1.250000e-01 : f32
    %190 = vector.broadcast %cst_62 : f32 to vector<1x128xf32>
    %191 = arith.mulf %189, %190 : vector<1x128xf32>
    %192 = vector.broadcast %191 : vector<1x128xf32> to vector<8x128xf32>
    %193 = arith.subf %185, %192 : vector<8x128xf32>
    %194 = arith.mulf %193, %193 : vector<8x128xf32>
    %cst_63 = arith.constant dense<0.000000e+00> : vector<128xf32>
    %195 = vector.multi_reduction <add>, %194, %cst_63 [0] : vector<8x128xf32> to vector<128xf32>
    %196 = vector.shape_cast %195 : vector<128xf32> to vector<1x128xf32>
    %cst_64 = arith.constant 1.250000e-01 : f32
    %197 = vector.broadcast %cst_64 : f32 to vector<1x128xf32>
    %198 = arith.mulf %196, %197 : vector<1x128xf32>
    %cst_65 = arith.constant 9.99999974E-6 : f32
    %199 = vector.broadcast %cst_65 : f32 to vector<1x128xf32>
    %200 = arith.addf %198, %199 : vector<1x128xf32>
    %201 = math.rsqrt %200 : vector<1x128xf32>
    %202 = arith.mulf %186, %201 : vector<1x128xf32>
    %203 = vector.broadcast %202 : vector<1x128xf32> to vector<8x128xf32>
    %204 = arith.mulf %193, %203 : vector<8x128xf32>
    %205 = vector.broadcast %187 : vector<1x128xf32> to vector<8x128xf32>
    %206 = arith.addf %204, %205 : vector<8x128xf32>
    %207 = arith.addf %206, %158 : vector<8x128xf32>
    %cst_66 = arith.constant 0.000000e+00 : f32
    %208 = vector.broadcast %cst_66 : f32 to vector<8x128xf32>
    %209 = arith.maximumf %207, %208 : vector<8x128xf32>
    %210 = arith.truncf %209 : vector<8x128xf32> to vector<8x128xbf16>
    %cst_67 = arith.constant dense<0.000000e+00> : vector<8x256xf32>
    %211 = tpu.matmul %210, %4, %cst_67 {dimension_numbers = #tpu.dot_dimension_numbers<[1], [0], [0], [1], [0, 0, 1, 1], [], []>} : vector<8x128xbf16>, vector<128x256xbf16>, vector<8x256xf32> -> vector<8x256xf32>
    %212 = vector.extract_strided_slice %211 {offsets = [0, 0], sizes = [8, 128], strides = [1, 1]} : vector<8x256xf32> to vector<8x128xf32>
    %213 = vector.extract_strided_slice %211 {offsets = [0, 128], sizes = [8, 128], strides = [1, 1]} : vector<8x256xf32> to vector<8x128xf32>
    %214 = vector.extract_strided_slice %1 {offsets = [16, 0], sizes = [1, 128], strides = [1, 1]} : vector<24x128xf32> to vector<1x128xf32>
    %215 = vector.extract_strided_slice %1 {offsets = [17, 0], sizes = [1, 128], strides = [1, 1]} : vector<24x128xf32> to vector<1x128xf32>
    %cst_68 = arith.constant dense<0.000000e+00> : vector<128xf32>
    %216 = vector.multi_reduction <add>, %212, %cst_68 [0] : vector<8x128xf32> to vector<128xf32>
    %217 = vector.shape_cast %216 : vector<128xf32> to vector<1x128xf32>
    %cst_69 = arith.constant 1.250000e-01 : f32
    %218 = vector.broadcast %cst_69 : f32 to vector<1x128xf32>
    %219 = arith.mulf %217, %218 : vector<1x128xf32>
    %220 = vector.broadcast %219 : vector<1x128xf32> to vector<8x128xf32>
    %221 = arith.subf %212, %220 : vector<8x128xf32>
    %222 = arith.mulf %221, %221 : vector<8x128xf32>
    %cst_70 = arith.constant dense<0.000000e+00> : vector<128xf32>
    %223 = vector.multi_reduction <add>, %222, %cst_70 [0] : vector<8x128xf32> to vector<128xf32>
    %224 = vector.shape_cast %223 : vector<128xf32> to vector<1x128xf32>
    %cst_71 = arith.constant 1.250000e-01 : f32
    %225 = vector.broadcast %cst_71 : f32 to vector<1x128xf32>
    %226 = arith.mulf %224, %225 : vector<1x128xf32>
    %cst_72 = arith.constant 9.99999974E-6 : f32
    %227 = vector.broadcast %cst_72 : f32 to vector<1x128xf32>
    %228 = arith.addf %226, %227 : vector<1x128xf32>
    %229 = math.rsqrt %228 : vector<1x128xf32>
    %230 = arith.mulf %214, %229 : vector<1x128xf32>
    %231 = vector.broadcast %230 : vector<1x128xf32> to vector<8x128xf32>
    %232 = arith.mulf %221, %231 : vector<8x128xf32>
    %233 = vector.broadcast %215 : vector<1x128xf32> to vector<8x128xf32>
    %234 = arith.addf %232, %233 : vector<8x128xf32>
    %cst_73 = arith.constant 0.000000e+00 : f32
    %235 = vector.broadcast %cst_73 : f32 to vector<8x128xf32>
    %236 = arith.maximumf %234, %235 : vector<8x128xf32>
    %237 = arith.truncf %236 : vector<8x128xf32> to vector<8x128xbf16>
    %cst_74 = arith.constant dense<0.000000e+00> : vector<8x128xf32>
    %238 = tpu.matmul %237, %9, %cst_74 {dimension_numbers = #tpu.dot_dimension_numbers<[1], [0], [0], [1], [0, 0, 1, 1], [], []>} : vector<8x128xbf16>, vector<128x128xbf16>, vector<8x128xf32> -> vector<8x128xf32>
    %239 = vector.extract_strided_slice %1 {offsets = [18, 0], sizes = [1, 128], strides = [1, 1]} : vector<24x128xf32> to vector<1x128xf32>
    %240 = vector.extract_strided_slice %1 {offsets = [19, 0], sizes = [1, 128], strides = [1, 1]} : vector<24x128xf32> to vector<1x128xf32>
    %cst_75 = arith.constant dense<0.000000e+00> : vector<128xf32>
    %241 = vector.multi_reduction <add>, %238, %cst_75 [0] : vector<8x128xf32> to vector<128xf32>
    %242 = vector.shape_cast %241 : vector<128xf32> to vector<1x128xf32>
    %cst_76 = arith.constant 1.250000e-01 : f32
    %243 = vector.broadcast %cst_76 : f32 to vector<1x128xf32>
    %244 = arith.mulf %242, %243 : vector<1x128xf32>
    %245 = vector.broadcast %244 : vector<1x128xf32> to vector<8x128xf32>
    %246 = arith.subf %238, %245 : vector<8x128xf32>
    %247 = arith.mulf %246, %246 : vector<8x128xf32>
    %cst_77 = arith.constant dense<0.000000e+00> : vector<128xf32>
    %248 = vector.multi_reduction <add>, %247, %cst_77 [0] : vector<8x128xf32> to vector<128xf32>
    %249 = vector.shape_cast %248 : vector<128xf32> to vector<1x128xf32>
    %cst_78 = arith.constant 1.250000e-01 : f32
    %250 = vector.broadcast %cst_78 : f32 to vector<1x128xf32>
    %251 = arith.mulf %249, %250 : vector<1x128xf32>
    %cst_79 = arith.constant 9.99999974E-6 : f32
    %252 = vector.broadcast %cst_79 : f32 to vector<1x128xf32>
    %253 = arith.addf %251, %252 : vector<1x128xf32>
    %254 = math.rsqrt %253 : vector<1x128xf32>
    %255 = arith.mulf %239, %254 : vector<1x128xf32>
    %256 = vector.broadcast %255 : vector<1x128xf32> to vector<8x128xf32>
    %257 = arith.mulf %246, %256 : vector<8x128xf32>
    %258 = vector.broadcast %240 : vector<1x128xf32> to vector<8x128xf32>
    %259 = arith.addf %257, %258 : vector<8x128xf32>
    %260 = vector.extract_strided_slice %1 {offsets = [20, 0], sizes = [1, 128], strides = [1, 1]} : vector<24x128xf32> to vector<1x128xf32>
    %261 = vector.extract_strided_slice %1 {offsets = [21, 0], sizes = [1, 128], strides = [1, 1]} : vector<24x128xf32> to vector<1x128xf32>
    %cst_80 = arith.constant dense<0.000000e+00> : vector<128xf32>
    %262 = vector.multi_reduction <add>, %213, %cst_80 [0] : vector<8x128xf32> to vector<128xf32>
    %263 = vector.shape_cast %262 : vector<128xf32> to vector<1x128xf32>
    %cst_81 = arith.constant 1.250000e-01 : f32
    %264 = vector.broadcast %cst_81 : f32 to vector<1x128xf32>
    %265 = arith.mulf %263, %264 : vector<1x128xf32>
    %266 = vector.broadcast %265 : vector<1x128xf32> to vector<8x128xf32>
    %267 = arith.subf %213, %266 : vector<8x128xf32>
    %268 = arith.mulf %267, %267 : vector<8x128xf32>
    %cst_82 = arith.constant dense<0.000000e+00> : vector<128xf32>
    %269 = vector.multi_reduction <add>, %268, %cst_82 [0] : vector<8x128xf32> to vector<128xf32>
    %270 = vector.shape_cast %269 : vector<128xf32> to vector<1x128xf32>
    %cst_83 = arith.constant 1.250000e-01 : f32
    %271 = vector.broadcast %cst_83 : f32 to vector<1x128xf32>
    %272 = arith.mulf %270, %271 : vector<1x128xf32>
    %cst_84 = arith.constant 9.99999974E-6 : f32
    %273 = vector.broadcast %cst_84 : f32 to vector<1x128xf32>
    %274 = arith.addf %272, %273 : vector<1x128xf32>
    %275 = math.rsqrt %274 : vector<1x128xf32>
    %276 = arith.mulf %260, %275 : vector<1x128xf32>
    %277 = vector.broadcast %276 : vector<1x128xf32> to vector<8x128xf32>
    %278 = arith.mulf %267, %277 : vector<8x128xf32>
    %279 = vector.broadcast %261 : vector<1x128xf32> to vector<8x128xf32>
    %280 = arith.addf %278, %279 : vector<8x128xf32>
    %281 = arith.addf %259, %280 : vector<8x128xf32>
    %cst_85 = arith.constant 0.000000e+00 : f32
    %282 = vector.broadcast %cst_85 : f32 to vector<8x128xf32>
    %283 = arith.maximumf %281, %282 : vector<8x128xf32>
    %284 = arith.truncf %283 : vector<8x128xf32> to vector<8x128xbf16>
    %cst_86 = arith.constant dense<0.000000e+00> : vector<8x128xf32>
    %285 = tpu.matmul %284, %10, %cst_86 {dimension_numbers = #tpu.dot_dimension_numbers<[1], [0], [0], [1], [0, 0, 1, 1], [], []>} : vector<8x128xbf16>, vector<128x128xbf16>, vector<8x128xf32> -> vector<8x128xf32>
    %286 = vector.extract_strided_slice %1 {offsets = [22, 0], sizes = [1, 128], strides = [1, 1]} : vector<24x128xf32> to vector<1x128xf32>
    %287 = vector.broadcast %286 : vector<1x128xf32> to vector<8x128xf32>
    %288 = arith.addf %285, %287 : vector<8x128xf32>
    %c0_87 = arith.constant 0 : index
    %c0_88 = arith.constant 0 : index
    %289 = vector.load %arg3[%c0_87, %c0_88] : memref<8x128xf32, #tpu.memory_space<vmem>>, vector<8x128xf32>
    tpu.vector_store %arg3[%c0_87, %c0_88], %288 {strides = array<i32>} : memref<8x128xf32, #tpu.memory_space<vmem>>, vector<8x128xf32>,
    return
  }
}

</mosaic_0001>

<llo_original>
// kernel: resnet_tabular_forward.1
$region0: #{resnet_tabular_forward.1}
  #allocation0 [shape = 'u32[]', space=smem, size = 0x4, offset = 0x4, fixed_abs, tag = 'smem constant byte address 0x4 - core index']
  #allocation1 [shape = 'u32[144,128]{1,0:T(1,128)}', space=vmem, size = 0x12000, scoped, tag = 'internal scratch']
  %s0 = inlined_call_operand.vmem [shape: f32[8,128], index: 0, kind: input, shape index: {}]
  %s1 = inlined_call_operand.hbm [shape: bf16[768,256], index: 1, kind: input, shape index: {}]
  %s2 = inlined_call_operand.vmem [shape: f32[24,128], index: 2, kind: input, shape index: {}]
  %s3 = inlined_call_operand.hbm [shape: f32[8,128], index: 3, kind: output, shape index: {}]
  %s4 = sld [smem:[#allocation0]]
  $region26: #{resnet_tabular_forward.1} parent=0
    _
  %s6 = ssub.s32 1, %s4
  %s7 = scalar_select 0, %s6, %s4
  $region1: #{resnet_tabular_forward.1} parent=0
    #allocation2 [shape = 'u8[393216]{0}', space=vmem, size = 0x60000, scoped, tag = 'input window, operand 1, single buffered']
    #allocation3 [shape = 's32[1]{0}', space=sflag, size = 0x4, scoped, tag = 'scoped memory for resnet_tabular_forward.1']
    #allocation4 [shape = 's32[1]{0}', space=sflag, size = 0x4, scoped, tag = 'scoped memory for resnet_tabular_forward.1']
    #allocation5 [shape = 'u8[4096]{0}', space=vmem, size = 0x1000, scoped, tag = 'output window, operand 0, single buffered']
    %8 = vsyncpa [#allocation3], 0
    %9 = vsyncpa [#allocation4], 0
    // Predicated region
    $region2: #{resnet_tabular_forward.1} parent=1 // pred_check
      _
    $region3: #{resnet_tabular_forward.1} parent=1 // pred_check_branch
      %11 = sbr.rel (0) target = $region5
    $region4: #{resnet_tabular_forward.1} parent=1 // pred_region
      _
    $region5: #{resnet_tabular_forward.1} parent=1 // pred_fallthru
      _
    // Predicated region
    $region6: #{resnet_tabular_forward.1} parent=1 // pred_check
      _
    $region7: #{resnet_tabular_forward.1} parent=1 // pred_check_branch
      %13 = sbr.rel (0) target = $region9
    $region8: #{resnet_tabular_forward.1} parent=1 // pred_region
      %s15 = ssub.s32 12288, 12288
      %16 = vsyncadd [#allocation3], %s15
      %s17 = sshll.u32 [#allocation2], 4
      %s18 = int_to_ptr.vmem [resolvable:$true] %s17
      %23 = dma.hbm_to_vmem [thread:$0]  %s1, 12288, %s18, [#allocation3], 128, 128, 8
    $region9: #{resnet_tabular_forward.1} parent=1 // pred_fallthru
      _
    // Predicated region
    $region10: #{resnet_tabular_forward.1} parent=1 // pred_check
      _
    $region11: #{resnet_tabular_forward.1} parent=1 // pred_check_branch
      %25 = sbr.rel (0) target = $region13
    $region12: #{resnet_tabular_forward.1} parent=1 // pred_region
      _
    $region13: #{resnet_tabular_forward.1} parent=1 // pred_fallthru
      _
    // Predicated region
    $region14: #{resnet_tabular_forward.1} parent=1 // pred_check
      _
    $region15: #{resnet_tabular_forward.1} parent=1 // pred_check_branch
      %27 = sbr.rel (0) target = $region17
    $region16: #{resnet_tabular_forward.1} parent=1 // pred_region
      %28 = dma.done [#allocation3], 12288
    $region17: #{resnet_tabular_forward.1} parent=1 // pred_fallthru
      _
    %v30 = vld [vmem:[%s0] sm:$0xff]
    %v31 = vld [vmem:[%s2] sm:$0xff]
    %v32 = vld [vmem:[%s2 + $0x8] sm:$0xff]
    %v33 = vld [vmem:[%s2 + $0x10] sm:$0xff]
    %v34 = vld [vmem:[#allocation2] sm:$0xff]
    %v35 = vld [vmem:[#allocation2 + $0x8] sm:$0xff]
    %v36 = vld [vmem:[#allocation2 + $0x10] sm:$0xff]
    %v37 = vld [vmem:[#allocation2 + $0x18] sm:$0xff]
    %v38 = vld [vmem:[#allocation2 + $0x20] sm:$0xff]
    %v39 = vld [vmem:[#allocation2 + $0x28] sm:$0xff]
    %v40 = vld [vmem:[#allocation2 + $0x30] sm:$0xff]
    %v41 = vld [vmem:[#allocation2 + $0x38] sm:$0xff]
    %v42 = vld [vmem:[#allocation2 + $0x40] sm:$0xff]
    %v43 = vld [vmem:[#allocation2 + $0x48] sm:$0xff]
    %v44 = vld [vmem:[#allocation2 + $0x50] sm:$0xff]
    %v45 = vld [vmem:[#allocation2 + $0x58] sm:$0xff]
    %v46 = vld [vmem:[#allocation2 + $0x60] sm:$0xff]
    %v47 = vld [vmem:[#allocation2 + $0x68] sm:$0xff]
    %v48 = vld [vmem:[#allocation2 + $0x70] sm:$0xff]
    %v49 = vld [vmem:[#allocation2 + $0x78] sm:$0xff]
    %v50 = vld [vmem:[#allocation2 + $0x80] sm:$0xff]
    %v51 = vld [vmem:[#allocation2 + $0x88] sm:$0xff]
    %v52 = vld [vmem:[#allocation2 + $0x90] sm:$0xff]
    %v53 = vld [vmem:[#allocation2 + $0x98] sm:$0xff]
    %v54 = vld [vmem:[#allocation2 + $0xa0] sm:$0xff]
    %v55 = vld [vmem:[#allocation2 + $0xa8] sm:$0xff]
    %v56 = vld [vmem:[#allocation2 + $0xb0] sm:$0xff]
    %v57 = vld [vmem:[#allocation2 + $0xb8] sm:$0xff]
    %v58 = vld [vmem:[#allocation2 + $0xc0] sm:$0xff]
    %v59 = vld [vmem:[#allocation2 + $0xc8] sm:$0xff]
    %v60 = vld [vmem:[#allocation2 + $0xd0] sm:$0xff]
    %v61 = vld [vmem:[#allocation2 + $0xd8] sm:$0xff]
    %v62 = vld [vmem:[#allocation2 + $0xe0] sm:$0xff]
    %v63 = vld [vmem:[#allocation2 + $0xe8] sm:$0xff]
    %v64 = vld [vmem:[#allocation2 + $0xf0] sm:$0xff]
    %v65 = vld [vmem:[#allocation2 + $0xf8] sm:$0xff]
    %v66 = vld [vmem:[#allocation2 + $0x100] sm:$0xff]
    %v67 = vld [vmem:[#allocation2 + $0x108] sm:$0xff]
    %v68 = vld [vmem:[#allocation2 + $0x110] sm:$0xff]
    %v69 = vld [vmem:[#allocation2 + $0x118] sm:$0xff]
    %v70 = vld [vmem:[#allocation2 + $0x120] sm:$0xff]
    %v71 = vld [vmem:[#allocation2 + $0x128] sm:$0xff]
    %v72 = vld [vmem:[#allocation2 + $0x130] sm:$0xff]
    %v73 = vld [vmem:[#allocation2 + $0x138] sm:$0xff]
    %v74 = vld [vmem:[#allocation2 + $0x140] sm:$0xff]
    %v75 = vld [vmem:[#allocation2 + $0x148] sm:$0xff]
    %v76 = vld [vmem:[#allocation2 + $0x150] sm:$0xff]
    %v77 = vld [vmem:[#allocation2 + $0x158] sm:$0xff]
    %v78 = vld [vmem:[#allocation2 + $0x160] sm:$0xff]
    %v79 = vld [vmem:[#allocation2 + $0x168] sm:$0xff]
    %v80 = vld [vmem:[#allocation2 + $0x170] sm:$0xff]
    %v81 = vld [vmem:[#allocation2 + $0x178] sm:$0xff]
    %v82 = vld [vmem:[#allocation2 + $0x180] sm:$0xf]
    %v83 = vld [vmem:[#allocation2 + $0x188] sm:$0xf]
    %v84 = vld [vmem:[#allocation2 + $0x190] sm:$0xf]
    %v85 = vld [vmem:[#allocation2 + $0x198] sm:$0xf]
    %v86 = vld [vmem:[#allocation2 + $0x1a0] sm:$0xf]
    %v87 = vld [vmem:[#allocation2 + $0x1a8] sm:$0xf]
    %v88 = vld [vmem:[#allocation2 + $0x1b0] sm:$0xf]
    %v89 = vld [vmem:[#allocation2 + $0x1b8] sm:$0xf]
    %v90 = vld [vmem:[#allocation2 + $0x1c0] sm:$0xf]
    %v91 = vld [vmem:[#allocation2 + $0x1c8] sm:$0xf]
    %v92 = vld [vmem:[#allocation2 + $0x1d0] sm:$0xf]
    %v93 = vld [vmem:[#allocation2 + $0x1d8] sm:$0xf]
    %v94 = vld [vmem:[#allocation2 + $0x1e0] sm:$0xf]
    %v95 = vld [vmem:[#allocation2 + $0x1e8] sm:$0xf]
    %v96 = vld [vmem:[#allocation2 + $0x1f0] sm:$0xf]
    %v97 = vld [vmem:[#allocation2 + $0x1f8] sm:$0xf]
    %v98 = vld [vmem:[#allocation2 + $0x184] sm:$0xf]
    %v99 = vld [vmem:[#allocation2 + $0x18c] sm:$0xf]
    %v100 = vld [vmem:[#allocation2 + $0x194] sm:$0xf]
    %v101 = vld [vmem:[#allocation2 + $0x19c] sm:$0xf]
    %v102 = vld [vmem:[#allocation2 + $0x1a4] sm:$0xf]
    %v103 = vld [vmem:[#allocation2 + $0x1ac] sm:$0xf]
    %v104 = vld [vmem:[#allocation2 + $0x1b4] sm:$0xf]
    %v105 = vld [vmem:[#allocation2 + $0x1bc] sm:$0xf]
    %v106 = vld [vmem:[#allocation2 + $0x1c4] sm:$0xf]
    %v107 = vld [vmem:[#allocation2 + $0x1cc] sm:$0xf]
    %v108 = vld [vmem:[#allocation2 + $0x1d4] sm:$0xf]
    %v109 = vld [vmem:[#allocation2 + $0x1dc] sm:$0xf]
    %v110 = vld [vmem:[#allocation2 + $0x1e4] sm:$0xf]
    %v111 = vld [vmem:[#allocation2 + $0x1ec] sm:$0xf]
    %v112 = vld [vmem:[#allocation2 + $0x1f4] sm:$0xf]
    %v113 = vld [vmem:[#allocation2 + $0x1fc] sm:$0xf]
    %v114 = vld [vmem:[#allocation2 + $0x200] sm:$0xf]
    %v115 = vld [vmem:[#allocation2 + $0x208] sm:$0xf]
    %v116 = vld [vmem:[#allocation2 + $0x210] sm:$0xf]
    %v117 = vld [vmem:[#allocation2 + $0x218] sm:$0xf]
    %v118 = vld [vmem:[#allocation2 + $0x220] sm:$0xf]
    %v119 = vld [vmem:[#allocation2 + $0x228] sm:$0xf]
    %v120 = vld [vmem:[#allocation2 + $0x230] sm:$0xf]
    %v121 = vld [vmem:[#allocation2 + $0x238] sm:$0xf]
    %v122 = vld [vmem:[#allocation2 + $0x240] sm:$0xf]
    %v123 = vld [vmem:[#allocation2 + $0x248] sm:$0xf]
    %v124 = vld [vmem:[#allocation2 + $0x250] sm:$0xf]
    %v125 = vld [vmem:[#allocation2 + $0x258] sm:$0xf]
    %v126 = vld [vmem:[#allocation2 + $0x260] sm:$0xf]
    %v127 = vld [vmem:[#allocation2 + $0x268] sm:$0xf]
    %v128 = vld [vmem:[#allocation2 + $0x270] sm:$0xf]
    %v129 = vld [vmem:[#allocation2 + $0x278] sm:$0xf]
    %v130 = vld [vmem:[#allocation2 + $0x204] sm:$0xf]
    %v131 = vld [vmem:[#allocation2 + $0x20c] sm:$0xf]
    %v132 = vld [vmem:[#allocation2 + $0x214] sm:$0xf]
    %v133 = vld [vmem:[#allocation2 + $0x21c] sm:$0xf]
    %v134 = vld [vmem:[#allocation2 + $0x224] sm:$0xf]
    %v135 = vld [vmem:[#allocation2 + $0x22c] sm:$0xf]
    %v136 = vld [vmem:[#allocation2 + $0x234] sm:$0xf]
    %v137 = vld [vmem:[#allocation2 + $0x23c] sm:$0xf]
    %v138 = vld [vmem:[#allocation2 + $0x244] sm:$0xf]
    %v139 = vld [vmem:[#allocation2 + $0x24c] sm:$0xf]
    %v140 = vld [vmem:[#allocation2 + $0x254] sm:$0xf]
    %v141 = vld [vmem:[#allocation2 + $0x25c] sm:$0xf]
    %v142 = vld [vmem:[#allocation2 + $0x264] sm:$0xf]
    %v143 = vld [vmem:[#allocation2 + $0x26c] sm:$0xf]
    %v144 = vld [vmem:[#allocation2 + $0x274] sm:$0xf]
    %v145 = vld [vmem:[#allocation2 + $0x27c] sm:$0xf]
    %v146 = vld [vmem:[#allocation2 + $0x280] sm:$0xf]
    %v147 = vld [vmem:[#allocation2 + $0x288] sm:$0xf]
    %v148 = vld [vmem:[#allocation2 + $0x290] sm:$0xf]
    %v149 = vld [vmem:[#allocation2 + $0x298] sm:$0xf]
    %v150 = vld [vmem:[#allocation2 + $0x2a0] sm:$0xf]
    %v151 = vld [vmem:[#allocation2 + $0x2a8] sm:$0xf]
    %v152 = vld [vmem:[#allocation2 + $0x2b0] sm:$0xf]
    %v153 = vld [vmem:[#allocation2 + $0x2b8] sm:$0xf]
    %v154 = vld [vmem:[#allocation2 + $0x2c0] sm:$0xf]
    %v155 = vld [vmem:[#allocation2 + $0x2c8] sm:$0xf]
    %v156 = vld [vmem:[#allocation2 + $0x2d0] sm:$0xf]
    %v157 = vld [vmem:[#allocation2 + $0x2d8] sm:$0xf]
    %v158 = vld [vmem:[#allocation2 + $0x2e0] sm:$0xf]
    %v159 = vld [vmem:[#allocation2 + $0x2e8] sm:$0xf]
    %v160 = vld [vmem:[#allocation2 + $0x2f0] sm:$0xf]
    %v161 = vld [vmem:[#allocation2 + $0x2f8] sm:$0xf]
    %v162 = vld [vmem:[#allocation2 + $0x284] sm:$0xf]
    %v163 = vld [vmem:[#allocation2 + $0x28c] sm:$0xf]
    %v164 = vld [vmem:[#allocation2 + $0x294] sm:$0xf]
    %v165 = vld [vmem:[#allocation2 + $0x29c] sm:$0xf]
    %v166 = vld [vmem:[#allocation2 + $0x2a4] sm:$0xf]
    %v167 = vld [vmem:[#allocation2 + $0x2ac] sm:$0xf]
    %v168 = vld [vmem:[#allocation2 + $0x2b4] sm:$0xf]
    %v169 = vld [vmem:[#allocation2 + $0x2bc] sm:$0xf]
    %v170 = vld [vmem:[#allocation2 + $0x2c4] sm:$0xf]
    %v171 = vld [vmem:[#allocation2 + $0x2cc] sm:$0xf]
    %v172 = vld [vmem:[#allocation2 + $0x2d4] sm:$0xf]
    %v173 = vld [vmem:[#allocation2 + $0x2dc] sm:$0xf]
    %v174 = vld [vmem:[#allocation2 + $0x2e4] sm:$0xf]
    %v175 = vld [vmem:[#allocation2 + $0x2ec] sm:$0xf]
    %v176 = vld [vmem:[#allocation2 + $0x2f4] sm:$0xf]
    %v177 = vld [vmem:[#allocation2 + $0x2fc] sm:$0xf]
    %v178 = vpack.c.bf16 %v30, %v30
    %v195 = vunpack.c.l.b16 %v34
    %v196 = vunpack.c.h.b16 %v34
    %v197 = vunpack.c.l.b16 %v35
    %v198 = vunpack.c.h.b16 %v35
    %v199 = vunpack.c.l.b16 %v36
    %v200 = vunpack.c.h.b16 %v36
    %v201 = vunpack.c.l.b16 %v37
    %v202 = vunpack.c.h.b16 %v37
    %v203 = vunpack.c.l.b16 %v38
    %v204 = vunpack.c.h.b16 %v38
    %v205 = vunpack.c.l.b16 %v39
    %v206 = vunpack.c.h.b16 %v39
    %v207 = vunpack.c.l.b16 %v40
    %v208 = vunpack.c.h.b16 %v40
    %v209 = vunpack.c.l.b16 %v41
    %v210 = vunpack.c.h.b16 %v41
    %v211 = vunpack.c.l.b16 %v42
    %v212 = vunpack.c.h.b16 %v42
    %v213 = vunpack.c.l.b16 %v43
    %v214 = vunpack.c.h.b16 %v43
    %v215 = vunpack.c.l.b16 %v44
    %v216 = vunpack.c.h.b16 %v44
    %v217 = vunpack.c.l.b16 %v45
    %v218 = vunpack.c.h.b16 %v45
    %v219 = vunpack.c.l.b16 %v46
    %v220 = vunpack.c.h.b16 %v46
    %v221 = vunpack.c.l.b16 %v47
    %v222 = vunpack.c.h.b16 %v47
    %v223 = vunpack.c.l.b16 %v48
    %v224 = vunpack.c.h.b16 %v48
    %v225 = vunpack.c.l.b16 %v49
    %v226 = vunpack.c.h.b16 %v49
    %v227 = vpack.c.b16 %v197, %v195
    %v228 = vpack.c.b16 %v198, %v196
    %v229 = vpack.c.b16 %v201, %v199
    %v230 = vpack.c.b16 %v202, %v200
    %v231 = vpack.c.b16 %v205, %v203
    %v232 = vpack.c.b16 %v206, %v204
    %v233 = vpack.c.b16 %v209, %v207
    %v234 = vpack.c.b16 %v210, %v208
    %v235 = vpack.c.b16 %v213, %v211
    %v236 = vpack.c.b16 %v214, %v212
    %v237 = vpack.c.b16 %v217, %v215
    %v238 = vpack.c.b16 %v218, %v216
    %v239 = vpack.c.b16 %v221, %v219
    %v240 = vpack.c.b16 %v222, %v220
    %v241 = vpack.c.b16 %v225, %v223
    %v242 = vpack.c.b16 %v226, %v224
    %259 = vmatprep.subr.bf16.mxu0 %v228
    %260 = vmatpush1.bf16.msra.mxu0 %v227
    %261 = vmatprep.subr.bf16.mxu0 %v230
    %262 = vmatpush1.bf16.msra.mxu0 %v229
    %263 = vmatprep.subr.bf16.mxu0 %v232
    %264 = vmatpush1.bf16.msra.mxu0 %v231
    %265 = vmatprep.subr.bf16.mxu0 %v234
    %266 = vmatpush1.bf16.msra.mxu0 %v233
    %267 = vmatprep.subr.bf16.mxu0 %v236
    %268 = vmatpush1.bf16.msra.mxu0 %v235
    %269 = vmatprep.subr.bf16.mxu0 %v238
    %270 = vmatpush1.bf16.msra.mxu0 %v237
    %271 = vmatprep.subr.bf16.mxu0 %v240
    %272 = vmatpush1.bf16.msra.mxu0 %v239
    %273 = vmatprep.subr.bf16.mxu0 %v242
    %274 = vmatpush1.bf16.msra.mxu0 %v241
    %275 = vmatprep.subr.bf16.mxu0 0
    %276 = vmatpush1.bf16.msra.mxu0 0
    %277 = vmatprep.subr.bf16.mxu0 0
    %278 = vmatpush1.bf16.msra.mxu0 0
    %279 = vmatprep.subr.bf16.mxu0 0
    %280 = vmatpush1.bf16.msra.mxu0 0
    %281 = vmatprep.subr.bf16.mxu0 0
    %282 = vmatpush1.bf16.msra.mxu0 0
    %283 = vmatprep.subr.bf16.mxu0 0
    %284 = vmatpush1.bf16.msra.mxu0 0
    %285 = vmatprep.subr.bf16.mxu0 0
    %286 = vmatpush1.bf16.msra.mxu0 0
    %287 = vmatprep.subr.bf16.mxu0 0
    %288 = vmatpush1.bf16.msra.mxu0 0
    %289 = vmatprep.subr.bf16.mxu0 0
    %290 = vmatpush1.bf16.msra.mxu0 0
    %291 = vmatprep.mubr.bf16.mxu0 0
    %292 = vmatmul.mubr.bf16.gmra.mrb[0].mxu0 %v178
    %v293 = vpop.f32.mrb[0].mxu0
    %v294 = vadd.f32 0.0, %v293
    %v295 = vpop.f32.mrb[0].mxu0
    %v296 = vadd.f32 0.0, %v295
    %v297 = vpop.f32.mrb[0].mxu0
    %v298 = vpop.f32.mrb[0].mxu0
    %299 = vdwg.mxu0
    %v300 = vrot.slane %v294, 4
    %v301 = vadd.f32 %v294, %v300
    %v302 = vrot.slane %v301, 2
    %v303 = vadd.f32 %v301, %v302
    %v304 = vrot.slane %v303, 1
    %v305 = vadd.f32 %v303, %v304
    %v306 = vmul.f32 %v305, 0.125
    %v307 = vsub.f32 %v294, %v306
    %v308 = vmul.f32 %v307, %v307
    %v309 = vrot.slane %v308, 4
    %v310 = vadd.f32 %v308, %v309
    %v311 = vrot.slane %v310, 2
    %v312 = vadd.f32 %v310, %v311
    %v313 = vrot.slane %v312, 1
    %v314 = vadd.f32 %v312, %v313
    %v315 = vmul.f32 %v314, 0.125
    %v316 = vadd.f32 %v315, 1e-05
    %v317 = vrsqrt.pop %v316
    %v318 = vmul.f32 %v31, %v317
    %v319 = vlaneseq
    %v320 = vshrl.u32 %v319, 7
    %v321 = vsub.s32 0, %v320
    %v322 = vrot.slane %v318, %v321
    %v323 = vmul.f32 %v307, %v322
    %v324 = vlaneseq
    %v325 = vshrl.u32 %v324, 7
    %v326 = vsub.s32 1, %v325
    %v327 = vrot.slane %v31, %v326
    %v328 = vadd.f32 %v323, %v327
    %v329 = vmax.f32 %v328, 0.0
    %v330 = vpack.c.bf16 %v329, %v329
    %v347 = vunpack.c.l.b16 %v82
    %v348 = vunpack.c.l.b16 %v83
    %v349 = vunpack.c.l.b16 %v84
    %v350 = vunpack.c.l.b16 %v85
    %v351 = vunpack.c.l.b16 %v86
    %v352 = vunpack.c.l.b16 %v87
    %v353 = vunpack.c.l.b16 %v88
    %v354 = vunpack.c.l.b16 %v89
    %v355 = vunpack.c.l.b16 %v90
    %v356 = vunpack.c.l.b16 %v91
    %v357 = vunpack.c.l.b16 %v92
    %v358 = vunpack.c.l.b16 %v93
    %v359 = vunpack.c.l.b16 %v94
    %v360 = vunpack.c.l.b16 %v95
    %v361 = vunpack.c.l.b16 %v96
    %v362 = vunpack.c.l.b16 %v97
    %v363 = vpack.c.b16 %v348, %v347
    %v364 = vpack.c.b16 %v350, %v349
    %v365 = vpack.c.b16 %v352, %v351
    %v366 = vpack.c.b16 %v354, %v353
    %v367 = vpack.c.b16 %v356, %v355
    %v368 = vpack.c.b16 %v358, %v357
    %v369 = vpack.c.b16 %v360, %v359
    %v370 = vpack.c.b16 %v362, %v361
    %379 = vmatprep.subr.bf16.mxu0 0
    %380 = vmatpush1.bf16.msra.mxu0 %v363
    %381 = vmatprep.subr.bf16.mxu0 0
    %382 = vmatpush1.bf16.msra.mxu0 %v364
    %383 = vmatprep.subr.bf16.mxu0 0
    %384 = vmatpush1.bf16.msra.mxu0 %v365
    %385 = vmatprep.subr.bf16.mxu0 0
    %386 = vmatpush1.bf16.msra.mxu0 %v366
    %387 = vmatprep.subr.bf16.mxu0 0
    %388 = vmatpush1.bf16.msra.mxu0 %v367
    %389 = vmatprep.subr.bf16.mxu0 0
    %390 = vmatpush1.bf16.msra.mxu0 %v368
    %391 = vmatprep.subr.bf16.mxu0 0
    %392 = vmatpush1.bf16.msra.mxu0 %v369
    %393 = vmatprep.subr.bf16.mxu0 0
    %394 = vmatpush1.bf16.msra.mxu0 %v370
    %395 = vmatprep.subr.bf16.mxu0 0
    %396 = vmatpush1.bf16.msra.mxu0 0
    %397 = vmatprep.subr.bf16.mxu0 0
    %398 = vmatpush1.bf16.msra.mxu0 0
    %399 = vmatprep.subr.bf16.mxu0 0
    %400 = vmatpush1.bf16.msra.mxu0 0
    %401 = vmatprep.subr.bf16.mxu0 0
    %402 = vmatpush1.bf16.msra.mxu0 0
    %403 = vmatprep.subr.bf16.mxu0 0
    %404 = vmatpush1.bf16.msra.mxu0 0
    %405 = vmatprep.subr.bf16.mxu0 0
    %406 = vmatpush1.bf16.msra.mxu0 0
    %407 = vmatprep.subr.bf16.mxu0 0
    %408 = vmatpush1.bf16.msra.mxu0 0
    %409 = vmatprep.subr.bf16.mxu0 0
    %410 = vmatpush1.bf16.msra.mxu0 0
    %411 = vmatprep.mubr.bf16.mxu0 0
    %412 = vmatmul.mubr.bf16.gmra.mrb[0].mxu0 %v330
    %v413 = vpop.f32.mrb[0].mxu0
    %v414 = vadd.f32 0.0, %v413
    %v415 = vpop.f32.mrb[0].mxu0
    %v416 = vpop.f32.mrb[0].mxu0
    %v417 = vpop.f32.mrb[0].mxu0
    %418 = vdwg.mxu0
    %v419 = vrot.slane %v414, 4
    %v420 = vadd.f32 %v414, %v419
    %v421 = vrot.slane %v420, 2
    %v422 = vadd.f32 %v420, %v421
    %v423 = vrot.slane %v422, 1
    %v424 = vadd.f32 %v422, %v423
    %v425 = vmul.f32 %v424, 0.125
    %v426 = vsub.f32 %v414, %v425
    %v427 = vmul.f32 %v426, %v426
    %v428 = vrot.slane %v427, 4
    %v429 = vadd.f32 %v427, %v428
    %v430 = vrot.slane %v429, 2
    %v431 = vadd.f32 %v429, %v430
    %v432 = vrot.slane %v431, 1
    %v433 = vadd.f32 %v431, %v432
    %v434 = vmul.f32 %v433, 0.125
    %v435 = vadd.f32 %v434, 1e-05
    %v436 = vrsqrt.pop %v435
    %v437 = vmul.f32 %v31, %v436
    %v438 = vlaneseq
    %v439 = vshrl.u32 %v438, 7
    %v440 = vsub.s32 2, %v439
    %v441 = vrot.slane %v437, %v440
    %v442 = vmul.f32 %v426, %v441
    %v443 = vlaneseq
    %v444 = vshrl.u32 %v443, 7
    %v445 = vsub.s32 3, %v444
    %v446 = vrot.slane %v31, %v445
    %v447 = vadd.f32 %v442, %v446
    %v448 = vrot.slane %v296, 4
    %v449 = vadd.f32 %v296, %v448
    %v450 = vrot.slane %v449, 2
    %v451 = vadd.f32 %v449, %v450
    %v452 = vrot.slane %v451, 1
    %v453 = vadd.f32 %v451, %v452
    %v454 = vmul.f32 %v453, 0.125
    %v455 = vsub.f32 %v296, %v454
    %v456 = vmul.f32 %v455, %v455
    %v457 = vrot.slane %v456, 4
    %v458 = vadd.f32 %v456, %v457
    %v459 = vrot.slane %v458, 2
    %v460 = vadd.f32 %v458, %v459
    %v461 = vrot.slane %v460, 1
    %v462 = vadd.f32 %v460, %v461
    %v463 = vmul.f32 %v462, 0.125
    %v464 = vadd.f32 %v463, 1e-05
    %v465 = vrsqrt.pop %v464
    %v466 = vmul.f32 %v31, %v465
    %v467 = vlaneseq
    %v468 = vshrl.u32 %v467, 7
    %v469 = vsub.s32 4, %v468
    %v470 = vrot.slane %v466, %v469
    %v471 = vmul.f32 %v455, %v470
    %v472 = vlaneseq
    %v473 = vshrl.u32 %v472, 7
    %v474 = vsub.s32 5, %v473
    %v475 = vrot.slane %v31, %v474
    %v476 = vadd.f32 %v471, %v475
    %v477 = vadd.f32 %v447, %v476
    %v478 = vmax.f32 %v477, 0.0
    %v479 = vpack.c.bf16 %v478, %v478
    %v496 = vunpack.c.l.b16 %v50
    %v497 = vunpack.c.h.b16 %v50
    %v498 = vunpack.c.l.b16 %v51
    %v499 = vunpack.c.h.b16 %v51
    %v500 = vunpack.c.l.b16 %v52
    %v501 = vunpack.c.h.b16 %v52
    %v502 = vunpack.c.l.b16 %v53
    %v503 = vunpack.c.h.b16 %v53
    %v504 = vunpack.c.l.b16 %v54
    %v505 = vunpack.c.h.b16 %v54
    %v506 = vunpack.c.l.b16 %v55
    %v507 = vunpack.c.h.b16 %v55
    %v508 = vunpack.c.l.b16 %v56
    %v509 = vunpack.c.h.b16 %v56
    %v510 = vunpack.c.l.b16 %v57
    %v511 = vunpack.c.h.b16 %v57
    %v512 = vunpack.c.l.b16 %v58
    %v513 = vunpack.c.h.b16 %v58
    %v514 = vunpack.c.l.b16 %v59
    %v515 = vunpack.c.h.b16 %v59
    %v516 = vunpack.c.l.b16 %v60
    %v517 = vunpack.c.h.b16 %v60
    %v518 = vunpack.c.l.b16 %v61
    %v519 = vunpack.c.h.b16 %v61
    %v520 = vunpack.c.l.b16 %v62
    %v521 = vunpack.c.h.b16 %v62
    %v522 = vunpack.c.l.b16 %v63
    %v523 = vunpack.c.h.b16 %v63
    %v524 = vunpack.c.l.b16 %v64
    %v525 = vunpack.c.h.b16 %v64
    %v526 = vunpack.c.l.b16 %v65
    %v527 = vunpack.c.h.b16 %v65
    %v528 = vpack.c.b16 %v498, %v496
    %v529 = vpack.c.b16 %v499, %v497
    %v530 = vpack.c.b16 %v502, %v500
    %v531 = vpack.c.b16 %v503, %v501
    %v532 = vpack.c.b16 %v506, %v504
    %v533 = vpack.c.b16 %v507, %v505
    %v534 = vpack.c.b16 %v510, %v508
    %v535 = vpack.c.b16 %v511, %v509
    %v536 = vpack.c.b16 %v514, %v512
    %v537 = vpack.c.b16 %v515, %v513
    %v538 = vpack.c.b16 %v518, %v516
    %v539 = vpack.c.b16 %v519, %v517
    %v540 = vpack.c.b16 %v522, %v520
    %v541 = vpack.c.b16 %v523, %v521
    %v542 = vpack.c.b16 %v526, %v524
    %v543 = vpack.c.b16 %v527, %v525
    %560 = vmatprep.subr.bf16.mxu0 %v529
    %561 = vmatpush1.bf16.msra.mxu0 %v528
    %562 = vmatprep.subr.bf16.mxu0 %v531
    %563 = vmatpush1.bf16.msra.mxu0 %v530
    %564 = vmatprep.subr.bf16.mxu0 %v533
    %565 = vmatpush1.bf16.msra.mxu0 %v532
    %566 = vmatprep.subr.bf16.mxu0 %v535
    %567 = vmatpush1.bf16.msra.mxu0 %v534
    %568 = vmatprep.subr.bf16.mxu0 %v537
    %569 = vmatpush1.bf16.msra.mxu0 %v536
    %570 = vmatprep.subr.bf16.mxu0 %v539
    %571 = vmatpush1.bf16.msra.mxu0 %v538
    %572 = vmatprep.subr.bf16.mxu0 %v541
    %573 = vmatpush1.bf16.msra.mxu0 %v540
    %574 = vmatprep.subr.bf16.mxu0 %v543
    %575 = vmatpush1.bf16.msra.mxu0 %v542
    %576 = vmatprep.subr.bf16.mxu0 0
    %577 = vmatpush1.bf16.msra.mxu0 0
    %578 = vmatprep.subr.bf16.mxu0 0
    %579 = vmatpush1.bf16.msra.mxu0 0
    %580 = vmatprep.subr.bf16.mxu0 0
    %581 = vmatpush1.bf16.msra.mxu0 0
    %582 = vmatprep.subr.bf16.mxu0 0
    %583 = vmatpush1.bf16.msra.mxu0 0
    %584 = vmatprep.subr.bf16.mxu0 0
    %585 = vmatpush1.bf16.msra.mxu0 0
    %586 = vmatprep.subr.bf16.mxu0 0
    %587 = vmatpush1.bf16.msra.mxu0 0
    %588 = vmatprep.subr.bf16.mxu0 0
    %589 = vmatpush1.bf16.msra.mxu0 0
    %590 = vmatprep.subr.bf16.mxu0 0
    %591 = vmatpush1.bf16.msra.mxu0 0
    %592 = vmatprep.mubr.bf16.mxu0 0
    %593 = vmatmul.mubr.bf16.gmra.mrb[0].mxu0 %v479
    %v594 = vpop.f32.mrb[0].mxu0
    %v595 = vadd.f32 0.0, %v594
    %v596 = vpop.f32.mrb[0].mxu0
    %v597 = vadd.f32 0.0, %v596
    %v598 = vpop.f32.mrb[0].mxu0
    %v599 = vpop.f32.mrb[0].mxu0
    %600 = vdwg.mxu0
    %v601 = vrot.slane %v595, 4
    %v602 = vadd.f32 %v595, %v601
    %v603 = vrot.slane %v602, 2
    %v604 = vadd.f32 %v602, %v603
    %v605 = vrot.slane %v604, 1
    %v606 = vadd.f32 %v604, %v605
    %v607 = vmul.f32 %v606, 0.125
    %v608 = vsub.f32 %v595, %v607
    %v609 = vmul.f32 %v608, %v608
    %v610 = vrot.slane %v609, 4
    %v611 = vadd.f32 %v609, %v610
    %v612 = vrot.slane %v611, 2
    %v613 = vadd.f32 %v611, %v612
    %v614 = vrot.slane %v613, 1
    %v615 = vadd.f32 %v613, %v614
    %v616 = vmul.f32 %v615, 0.125
    %v617 = vadd.f32 %v616, 1e-05
    %v618 = vrsqrt.pop %v617
    %v619 = vmul.f32 %v31, %v618
    %v620 = vlaneseq
    %v621 = vshrl.u32 %v620, 7
    %v622 = vsub.s32 6, %v621
    %v623 = vrot.slane %v619, %v622
    %v624 = vmul.f32 %v608, %v623
    %v625 = vlaneseq
    %v626 = vshrl.u32 %v625, 7
    %v627 = vsub.s32 7, %v626
    %v628 = vrot.slane %v31, %v627
    %v629 = vadd.f32 %v624, %v628
    %v630 = vmax.f32 %v629, 0.0
    %v631 = vpack.c.bf16 %v630, %v630
    %v648 = vunpack.c.l.b16 %v98
    %v649 = vunpack.c.l.b16 %v99
    %v650 = vunpack.c.l.b16 %v100
    %v651 = vunpack.c.l.b16 %v101
    %v652 = vunpack.c.l.b16 %v102
    %v653 = vunpack.c.l.b16 %v103
    %v654 = vunpack.c.l.b16 %v104
    %v655 = vunpack.c.l.b16 %v105
    %v656 = vunpack.c.l.b16 %v106
    %v657 = vunpack.c.l.b16 %v107
    %v658 = vunpack.c.l.b16 %v108
    %v659 = vunpack.c.l.b16 %v109
    %v660 = vunpack.c.l.b16 %v110
    %v661 = vunpack.c.l.b16 %v111
    %v662 = vunpack.c.l.b16 %v112
    %v663 = vunpack.c.l.b16 %v113
    %v664 = vpack.c.b16 %v649, %v648
    %v665 = vpack.c.b16 %v651, %v650
    %v666 = vpack.c.b16 %v653, %v652
    %v667 = vpack.c.b16 %v655, %v654
    %v668 = vpack.c.b16 %v657, %v656
    %v669 = vpack.c.b16 %v659, %v658
    %v670 = vpack.c.b16 %v661, %v660
    %v671 = vpack.c.b16 %v663, %v662
    %680 = vmatprep.subr.bf16.mxu0 0
    %681 = vmatpush1.bf16.msra.mxu0 %v664
    %682 = vmatprep.subr.bf16.mxu0 0
    %683 = vmatpush1.bf16.msra.mxu0 %v665
    %684 = vmatprep.subr.bf16.mxu0 0
    %685 = vmatpush1.bf16.msra.mxu0 %v666
    %686 = vmatprep.subr.bf16.mxu0 0
    %687 = vmatpush1.bf16.msra.mxu0 %v667
    %688 = vmatprep.subr.bf16.mxu0 0
    %689 = vmatpush1.bf16.msra.mxu0 %v668
    %690 = vmatprep.subr.bf16.mxu0 0
    %691 = vmatpush1.bf16.msra.mxu0 %v669
    %692 = vmatprep.subr.bf16.mxu0 0
    %693 = vmatpush1.bf16.msra.mxu0 %v670
    %694 = vmatprep.subr.bf16.mxu0 0
    %695 = vmatpush1.bf16.msra.mxu0 %v671
    %696 = vmatprep.subr.bf16.mxu0 0
    %697 = vmatpush1.bf16.msra.mxu0 0
    %698 = vmatprep.subr.bf16.mxu0 0
    %699 = vmatpush1.bf16.msra.mxu0 0
    %700 = vmatprep.subr.bf16.mxu0 0
    %701 = vmatpush1.bf16.msra.mxu0 0
    %702 = vmatprep.subr.bf16.mxu0 0
    %703 = vmatpush1.bf16.msra.mxu0 0
    %704 = vmatprep.subr.bf16.mxu0 0
    %705 = vmatpush1.bf16.msra.mxu0 0
    %706 = vmatprep.subr.bf16.mxu0 0
    %707 = vmatpush1.bf16.msra.mxu0 0
    %708 = vmatprep.subr.bf16.mxu0 0
    %709 = vmatpush1.bf16.msra.mxu0 0
    %710 = vmatprep.subr.bf16.mxu0 0
    %711 = vmatpush1.bf16.msra.mxu0 0
    %712 = vmatprep.mubr.bf16.mxu0 0
    %713 = vmatmul.mubr.bf16.gmra.mrb[0].mxu0 %v631
    %v714 = vpop.f32.mrb[0].mxu0
    %v715 = vadd.f32 0.0, %v714
    %v716 = vpop.f32.mrb[0].mxu0
    %v717 = vpop.f32.mrb[0].mxu0
    %v718 = vpop.f32.mrb[0].mxu0
    %719 = vdwg.mxu0
    %v720 = vrot.slane %v715, 4
    %v721 = vadd.f32 %v715, %v720
    %v722 = vrot.slane %v721, 2
    %v723 = vadd.f32 %v721, %v722
    %v724 = vrot.slane %v723, 1
    %v725 = vadd.f32 %v723, %v724
    %v726 = vmul.f32 %v725, 0.125
    %v727 = vsub.f32 %v715, %v726
    %v728 = vmul.f32 %v727, %v727
    %v729 = vrot.slane %v728, 4
    %v730 = vadd.f32 %v728, %v729
    %v731 = vrot.slane %v730, 2
    %v732 = vadd.f32 %v730, %v731
    %v733 = vrot.slane %v732, 1
    %v734 = vadd.f32 %v732, %v733
    %v735 = vmul.f32 %v734, 0.125
    %v736 = vadd.f32 %v735, 1e-05
    %v737 = vrsqrt.pop %v736
    %v738 = vmul.f32 %v32, %v737
    %v739 = vlaneseq
    %v740 = vshrl.u32 %v739, 7
    %v741 = vsub.s32 0, %v740
    %v742 = vrot.slane %v738, %v741
    %v743 = vmul.f32 %v727, %v742
    %v744 = vlaneseq
    %v745 = vshrl.u32 %v744, 7
    %v746 = vsub.s32 1, %v745
    %v747 = vrot.slane %v32, %v746
    %v748 = vadd.f32 %v743, %v747
    %v749 = vrot.slane %v597, 4
    %v750 = vadd.f32 %v597, %v749
    %v751 = vrot.slane %v750, 2
    %v752 = vadd.f32 %v750, %v751
    %v753 = vrot.slane %v752, 1
    %v754 = vadd.f32 %v752, %v753
    %v755 = vmul.f32 %v754, 0.125
    %v756 = vsub.f32 %v597, %v755
    %v757 = vmul.f32 %v756, %v756
    %v758 = vrot.slane %v757, 4
    %v759 = vadd.f32 %v757, %v758
    %v760 = vrot.slane %v759, 2
    %v761 = vadd.f32 %v759, %v760
    %v762 = vrot.slane %v761, 1
    %v763 = vadd.f32 %v761, %v762
    %v764 = vmul.f32 %v763, 0.125
    %v765 = vadd.f32 %v764, 1e-05
    %v766 = vrsqrt.pop %v765
    %v767 = vmul.f32 %v32, %v766
    %v768 = vlaneseq
    %v769 = vshrl.u32 %v768, 7
    %v770 = vsub.s32 2, %v769
    %v771 = vrot.slane %v767, %v770
    %v772 = vmul.f32 %v756, %v771
    %v773 = vlaneseq
    %v774 = vshrl.u32 %v773, 7
    %v775 = vsub.s32 3, %v774
    %v776 = vrot.slane %v32, %v775
    %v777 = vadd.f32 %v772, %v776
    %v778 = vadd.f32 %v748, %v777
    %v779 = vmax.f32 %v778, 0.0
    %v780 = vpack.c.bf16 %v779, %v779
    %v797 = vunpack.c.l.b16 %v114
    %v798 = vunpack.c.l.b16 %v115
    %v799 = vunpack.c.l.b16 %v116
    %v800 = vunpack.c.l.b16 %v117
    %v801 = vunpack.c.l.b16 %v118
    %v802 = vunpack.c.l.b16 %v119
    %v803 = vunpack.c.l.b16 %v120
    %v804 = vunpack.c.l.b16 %v121
    %v805 = vunpack.c.l.b16 %v122
    %v806 = vunpack.c.l.b16 %v123
    %v807 = vunpack.c.l.b16 %v124
    %v808 = vunpack.c.l.b16 %v125
    %v809 = vunpack.c.l.b16 %v126
    %v810 = vunpack.c.l.b16 %v127
    %v811 = vunpack.c.l.b16 %v128
    %v812 = vunpack.c.l.b16 %v129
    %v813 = vpack.c.b16 %v798, %v797
    %v814 = vpack.c.b16 %v800, %v799
    %v815 = vpack.c.b16 %v802, %v801
    %v816 = vpack.c.b16 %v804, %v803
    %v817 = vpack.c.b16 %v806, %v805
    %v818 = vpack.c.b16 %v808, %v807
    %v819 = vpack.c.b16 %v810, %v809
    %v820 = vpack.c.b16 %v812, %v811
    %829 = vmatprep.subr.bf16.mxu0 0
    %830 = vmatpush1.bf16.msra.mxu0 %v813
    %831 = vmatprep.subr.bf16.mxu0 0
    %832 = vmatpush1.bf16.msra.mxu0 %v814
    %833 = vmatprep.subr.bf16.mxu0 0
    %834 = vmatpush1.bf16.msra.mxu0 %v815
    %835 = vmatprep.subr.bf16.mxu0 0
    %836 = vmatpush1.bf16.msra.mxu0 %v816
    %837 = vmatprep.subr.bf16.mxu0 0
    %838 = vmatpush1.bf16.msra.mxu0 %v817
    %839 = vmatprep.subr.bf16.mxu0 0
    %840 = vmatpush1.bf16.msra.mxu0 %v818
    %841 = vmatprep.subr.bf16.mxu0 0
    %842 = vmatpush1.bf16.msra.mxu0 %v819
    %843 = vmatprep.subr.bf16.mxu0 0
    %844 = vmatpush1.bf16.msra.mxu0 %v820
    %845 = vmatprep.subr.bf16.mxu0 0
    %846 = vmatpush1.bf16.msra.mxu0 0
    %847 = vmatprep.subr.bf16.mxu0 0
    %848 = vmatpush1.bf16.msra.mxu0 0
    %849 = vmatprep.subr.bf16.mxu0 0
    %850 = vmatpush1.bf16.msra.mxu0 0
    %851 = vmatprep.subr.bf16.mxu0 0
    %852 = vmatpush1.bf16.msra.mxu0 0
    %853 = vmatprep.subr.bf16.mxu0 0
    %854 = vmatpush1.bf16.msra.mxu0 0
    %855 = vmatprep.subr.bf16.mxu0 0
    %856 = vmatpush1.bf16.msra.mxu0 0
    %857 = vmatprep.subr.bf16.mxu0 0
    %858 = vmatpush1.bf16.msra.mxu0 0
    %859 = vmatprep.subr.bf16.mxu0 0
    %860 = vmatpush1.bf16.msra.mxu0 0
    %861 = vmatprep.mubr.bf16.mxu0 0
    %862 = vmatmul.mubr.bf16.gmra.mrb[0].mxu0 %v780
    %v863 = vpop.f32.mrb[0].mxu0
    %v864 = vadd.f32 0.0, %v863
    %v865 = vpop.f32.mrb[0].mxu0
    %v866 = vpop.f32.mrb[0].mxu0
    %v867 = vpop.f32.mrb[0].mxu0
    %868 = vdwg.mxu0
    %v869 = vrot.slane %v864, 4
    %v870 = vadd.f32 %v864, %v869
    %v871 = vrot.slane %v870, 2
    %v872 = vadd.f32 %v870, %v871
    %v873 = vrot.slane %v872, 1
    %v874 = vadd.f32 %v872, %v873
    %v875 = vmul.f32 %v874, 0.125
    %v876 = vsub.f32 %v864, %v875
    %v877 = vmul.f32 %v876, %v876
    %v878 = vrot.slane %v877, 4
    %v879 = vadd.f32 %v877, %v878
    %v880 = vrot.slane %v879, 2
    %v881 = vadd.f32 %v879, %v880
    %v882 = vrot.slane %v881, 1
    %v883 = vadd.f32 %v881, %v882
    %v884 = vmul.f32 %v883, 0.125
    %v885 = vadd.f32 %v884, 1e-05
    %v886 = vrsqrt.pop %v885
    %v887 = vmul.f32 %v32, %v886
    %v888 = vlaneseq
    %v889 = vshrl.u32 %v888, 7
    %v890 = vsub.s32 4, %v889
    %v891 = vrot.slane %v887, %v890
    %v892 = vmul.f32 %v876, %v891
    %v893 = vlaneseq
    %v894 = vshrl.u32 %v893, 7
    %v895 = vsub.s32 5, %v894
    %v896 = vrot.slane %v32, %v895
    %v897 = vadd.f32 %v892, %v896
    %v898 = vmax.f32 %v897, 0.0
    %v899 = vpack.c.bf16 %v898, %v898
    %v916 = vunpack.c.l.b16 %v130
    %v917 = vunpack.c.l.b16 %v131
    %v918 = vunpack.c.l.b16 %v132
    %v919 = vunpack.c.l.b16 %v133
    %v920 = vunpack.c.l.b16 %v134
    %v921 = vunpack.c.l.b16 %v135
    %v922 = vunpack.c.l.b16 %v136
    %v923 = vunpack.c.l.b16 %v137
    %v924 = vunpack.c.l.b16 %v138
    %v925 = vunpack.c.l.b16 %v139
    %v926 = vunpack.c.l.b16 %v140
    %v927 = vunpack.c.l.b16 %v141
    %v928 = vunpack.c.l.b16 %v142
    %v929 = vunpack.c.l.b16 %v143
    %v930 = vunpack.c.l.b16 %v144
    %v931 = vunpack.c.l.b16 %v145
    %v932 = vpack.c.b16 %v917, %v916
    %v933 = vpack.c.b16 %v919, %v918
    %v934 = vpack.c.b16 %v921, %v920
    %v935 = vpack.c.b16 %v923, %v922
    %v936 = vpack.c.b16 %v925, %v924
    %v937 = vpack.c.b16 %v927, %v926
    %v938 = vpack.c.b16 %v929, %v928
    %v939 = vpack.c.b16 %v931, %v930
    %948 = vmatprep.subr.bf16.mxu0 0
    %949 = vmatpush1.bf16.msra.mxu0 %v932
    %950 = vmatprep.subr.bf16.mxu0 0
    %951 = vmatpush1.bf16.msra.mxu0 %v933
    %952 = vmatprep.subr.bf16.mxu0 0
    %953 = vmatpush1.bf16.msra.mxu0 %v934
    %954 = vmatprep.subr.bf16.mxu0 0
    %955 = vmatpush1.bf16.msra.mxu0 %v935
    %956 = vmatprep.subr.bf16.mxu0 0
    %957 = vmatpush1.bf16.msra.mxu0 %v936
    %958 = vmatprep.subr.bf16.mxu0 0
    %959 = vmatpush1.bf16.msra.mxu0 %v937
    %960 = vmatprep.subr.bf16.mxu0 0
    %961 = vmatpush1.bf16.msra.mxu0 %v938
    %962 = vmatprep.subr.bf16.mxu0 0
    %963 = vmatpush1.bf16.msra.mxu0 %v939
    %964 = vmatprep.subr.bf16.mxu0 0
    %965 = vmatpush1.bf16.msra.mxu0 0
    %966 = vmatprep.subr.bf16.mxu0 0
    %967 = vmatpush1.bf16.msra.mxu0 0
    %968 = vmatprep.subr.bf16.mxu0 0
    %969 = vmatpush1.bf16.msra.mxu0 0
    %970 = vmatprep.subr.bf16.mxu0 0
    %971 = vmatpush1.bf16.msra.mxu0 0
    %972 = vmatprep.subr.bf16.mxu0 0
    %973 = vmatpush1.bf16.msra.mxu0 0
    %974 = vmatprep.subr.bf16.mxu0 0
    %975 = vmatpush1.bf16.msra.mxu0 0
    %976 = vmatprep.subr.bf16.mxu0 0
    %977 = vmatpush1.bf16.msra.mxu0 0
    %978 = vmatprep.subr.bf16.mxu0 0
    %979 = vmatpush1.bf16.msra.mxu0 0
    %980 = vmatprep.mubr.bf16.mxu0 0
    %981 = vmatmul.mubr.bf16.gmra.mrb[0].mxu0 %v899
    %v982 = vpop.f32.mrb[0].mxu0
    %v983 = vadd.f32 0.0, %v982
    %v984 = vpop.f32.mrb[0].mxu0
    %v985 = vpop.f32.mrb[0].mxu0
    %v986 = vpop.f32.mrb[0].mxu0
    %987 = vdwg.mxu0
    %v988 = vrot.slane %v983, 4
    %v989 = vadd.f32 %v983, %v988
    %v990 = vrot.slane %v989, 2
    %v991 = vadd.f32 %v989, %v990
    %v992 = vrot.slane %v991, 1
    %v993 = vadd.f32 %v991, %v992
    %v994 = vmul.f32 %v993, 0.125
    %v995 = vsub.f32 %v983, %v994
    %v996 = vmul.f32 %v995, %v995
    %v997 = vrot.slane %v996, 4
    %v998 = vadd.f32 %v996, %v997
    %v999 = vrot.slane %v998, 2
    %v1000 = vadd.f32 %v998, %v999
    %v1001 = vrot.slane %v1000, 1
    %v1002 = vadd.f32 %v1000, %v1001
    %v1003 = vmul.f32 %v1002, 0.125
    %v1004 = vadd.f32 %v1003, 1e-05
    %v1005 = vrsqrt.pop %v1004
    %v1006 = vmul.f32 %v32, %v1005
    %v1007 = vlaneseq
    %v1008 = vshrl.u32 %v1007, 7
    %v1009 = vsub.s32 6, %v1008
    %v1010 = vrot.slane %v1006, %v1009
    %v1011 = vmul.f32 %v995, %v1010
    %v1012 = vlaneseq
    %v1013 = vshrl.u32 %v1012, 7
    %v1014 = vsub.s32 7, %v1013
    %v1015 = vrot.slane %v32, %v1014
    %v1016 = vadd.f32 %v1011, %v1015
    %v1017 = vadd.f32 %v1016, %v779
    %v1018 = vmax.f32 %v1017, 0.0
    %v1019 = vpack.c.bf16 %v1018, %v1018
    %v1036 = vunpack.c.l.b16 %v66
    %v1037 = vunpack.c.h.b16 %v66
    %v1038 = vunpack.c.l.b16 %v67
    %v1039 = vunpack.c.h.b16 %v67
    %v1040 = vunpack.c.l.b16 %v68
    %v1041 = vunpack.c.h.b16 %v68
    %v1042 = vunpack.c.l.b16 %v69
    %v1043 = vunpack.c.h.b16 %v69
    %v1044 = vunpack.c.l.b16 %v70
    %v1045 = vunpack.c.h.b16 %v70
    %v1046 = vunpack.c.l.b16 %v71
    %v1047 = vunpack.c.h.b16 %v71
    %v1048 = vunpack.c.l.b16 %v72
    %v1049 = vunpack.c.h.b16 %v72
    %v1050 = vunpack.c.l.b16 %v73
    %v1051 = vunpack.c.h.b16 %v73
    %v1052 = vunpack.c.l.b16 %v74
    %v1053 = vunpack.c.h.b16 %v74
    %v1054 = vunpack.c.l.b16 %v75
    %v1055 = vunpack.c.h.b16 %v75
    %v1056 = vunpack.c.l.b16 %v76
    %v1057 = vunpack.c.h.b16 %v76
    %v1058 = vunpack.c.l.b16 %v77
    %v1059 = vunpack.c.h.b16 %v77
    %v1060 = vunpack.c.l.b16 %v78
    %v1061 = vunpack.c.h.b16 %v78
    %v1062 = vunpack.c.l.b16 %v79
    %v1063 = vunpack.c.h.b16 %v79
    %v1064 = vunpack.c.l.b16 %v80
    %v1065 = vunpack.c.h.b16 %v80
    %v1066 = vunpack.c.l.b16 %v81
    %v1067 = vunpack.c.h.b16 %v81
    %v1068 = vpack.c.b16 %v1038, %v1036
    %v1069 = vpack.c.b16 %v1039, %v1037
    %v1070 = vpack.c.b16 %v1042, %v1040
    %v1071 = vpack.c.b16 %v1043, %v1041
    %v1072 = vpack.c.b16 %v1046, %v1044
    %v1073 = vpack.c.b16 %v1047, %v1045
    %v1074 = vpack.c.b16 %v1050, %v1048
    %v1075 = vpack.c.b16 %v1051, %v1049
    %v1076 = vpack.c.b16 %v1054, %v1052
    %v1077 = vpack.c.b16 %v1055, %v1053
    %v1078 = vpack.c.b16 %v1058, %v1056
    %v1079 = vpack.c.b16 %v1059, %v1057
    %v1080 = vpack.c.b16 %v1062, %v1060
    %v1081 = vpack.c.b16 %v1063, %v1061
    %v1082 = vpack.c.b16 %v1066, %v1064
    %v1083 = vpack.c.b16 %v1067, %v1065
    %1100 = vmatprep.subr.bf16.mxu0 %v1069
    %1101 = vmatpush1.bf16.msra.mxu0 %v1068
    %1102 = vmatprep.subr.bf16.mxu0 %v1071
    %1103 = vmatpush1.bf16.msra.mxu0 %v1070
    %1104 = vmatprep.subr.bf16.mxu0 %v1073
    %1105 = vmatpush1.bf16.msra.mxu0 %v1072
    %1106 = vmatprep.subr.bf16.mxu0 %v1075
    %1107 = vmatpush1.bf16.msra.mxu0 %v1074
    %1108 = vmatprep.subr.bf16.mxu0 %v1077
    %1109 = vmatpush1.bf16.msra.mxu0 %v1076
    %1110 = vmatprep.subr.bf16.mxu0 %v1079
    %1111 = vmatpush1.bf16.msra.mxu0 %v1078
    %1112 = vmatprep.subr.bf16.mxu0 %v1081
    %1113 = vmatpush1.bf16.msra.mxu0 %v1080
    %1114 = vmatprep.subr.bf16.mxu0 %v1083
    %1115 = vmatpush1.bf16.msra.mxu0 %v1082
    %1116 = vmatprep.subr.bf16.mxu0 0
    %1117 = vmatpush1.bf16.msra.mxu0 0
    %1118 = vmatprep.subr.bf16.mxu0 0
    %1119 = vmatpush1.bf16.msra.mxu0 0
    %1120 = vmatprep.subr.bf16.mxu0 0
    %1121 = vmatpush1.bf16.msra.mxu0 0
    %1122 = vmatprep.subr.bf16.mxu0 0
    %1123 = vmatpush1.bf16.msra.mxu0 0
    %1124 = vmatprep.subr.bf16.mxu0 0
    %1125 = vmatpush1.bf16.msra.mxu0 0
    %1126 = vmatprep.subr.bf16.mxu0 0
    %1127 = vmatpush1.bf16.msra.mxu0 0
    %1128 = vmatprep.subr.bf16.mxu0 0
    %1129 = vmatpush1.bf16.msra.mxu0 0
    %1130 = vmatprep.subr.bf16.mxu0 0
    %1131 = vmatpush1.bf16.msra.mxu0 0
    %1132 = vmatprep.mubr.bf16.mxu0 0
    %1133 = vmatmul.mubr.bf16.gmra.mrb[0].mxu0 %v1019
    %v1134 = vpop.f32.mrb[0].mxu0
    %v1135 = vadd.f32 0.0, %v1134
    %v1136 = vpop.f32.mrb[0].mxu0
    %v1137 = vadd.f32 0.0, %v1136
    %v1138 = vpop.f32.mrb[0].mxu0
    %v1139 = vpop.f32.mrb[0].mxu0
    %1140 = vdwg.mxu0
    %v1141 = vrot.slane %v1135, 4
    %v1142 = vadd.f32 %v1135, %v1141
    %v1143 = vrot.slane %v1142, 2
    %v1144 = vadd.f32 %v1142, %v1143
    %v1145 = vrot.slane %v1144, 1
    %v1146 = vadd.f32 %v1144, %v1145
    %v1147 = vmul.f32 %v1146, 0.125
    %v1148 = vsub.f32 %v1135, %v1147
    %v1149 = vmul.f32 %v1148, %v1148
    %v1150 = vrot.slane %v1149, 4
    %v1151 = vadd.f32 %v1149, %v1150
    %v1152 = vrot.slane %v1151, 2
    %v1153 = vadd.f32 %v1151, %v1152
    %v1154 = vrot.slane %v1153, 1
    %v1155 = vadd.f32 %v1153, %v1154
    %v1156 = vmul.f32 %v1155, 0.125
    %v1157 = vadd.f32 %v1156, 1e-05
    %v1158 = vrsqrt.pop %v1157
    %v1159 = vmul.f32 %v33, %v1158
    %v1160 = vlaneseq
    %v1161 = vshrl.u32 %v1160, 7
    %v1162 = vsub.s32 0, %v1161
    %v1163 = vrot.slane %v1159, %v1162
    %v1164 = vmul.f32 %v1148, %v1163
    %v1165 = vlaneseq
    %v1166 = vshrl.u32 %v1165, 7
    %v1167 = vsub.s32 1, %v1166
    %v1168 = vrot.slane %v33, %v1167
    %v1169 = vadd.f32 %v1164, %v1168
    %v1170 = vmax.f32 %v1169, 0.0
    %v1171 = vpack.c.bf16 %v1170, %v1170
    %v1188 = vunpack.c.l.b16 %v146
    %v1189 = vunpack.c.l.b16 %v147
    %v1190 = vunpack.c.l.b16 %v148
    %v1191 = vunpack.c.l.b16 %v149
    %v1192 = vunpack.c.l.b16 %v150
    %v1193 = vunpack.c.l.b16 %v151
    %v1194 = vunpack.c.l.b16 %v152
    %v1195 = vunpack.c.l.b16 %v153
    %v1196 = vunpack.c.l.b16 %v154
    %v1197 = vunpack.c.l.b16 %v155
    %v1198 = vunpack.c.l.b16 %v156
    %v1199 = vunpack.c.l.b16 %v157
    %v1200 = vunpack.c.l.b16 %v158
    %v1201 = vunpack.c.l.b16 %v159
    %v1202 = vunpack.c.l.b16 %v160
    %v1203 = vunpack.c.l.b16 %v161
    %v1204 = vpack.c.b16 %v1189, %v1188
    %v1205 = vpack.c.b16 %v1191, %v1190
    %v1206 = vpack.c.b16 %v1193, %v1192
    %v1207 = vpack.c.b16 %v1195, %v1194
    %v1208 = vpack.c.b16 %v1197, %v1196
    %v1209 = vpack.c.b16 %v1199, %v1198
    %v1210 = vpack.c.b16 %v1201, %v1200
    %v1211 = vpack.c.b16 %v1203, %v1202
    %1220 = vmatprep.subr.bf16.mxu0 0
    %1221 = vmatpush1.bf16.msra.mxu0 %v1204
    %1222 = vmatprep.subr.bf16.mxu0 0
    %1223 = vmatpush1.bf16.msra.mxu0 %v1205
    %1224 = vmatprep.subr.bf16.mxu0 0
    %1225 = vmatpush1.bf16.msra.mxu0 %v1206
    %1226 = vmatprep.subr.bf16.mxu0 0
    %1227 = vmatpush1.bf16.msra.mxu0 %v1207
    %1228 = vmatprep.subr.bf16.mxu0 0
    %1229 = vmatpush1.bf16.msra.mxu0 %v1208
    %1230 = vmatprep.subr.bf16.mxu0 0
    %1231 = vmatpush1.bf16.msra.mxu0 %v1209
    %1232 = vmatprep.subr.bf16.mxu0 0
    %1233 = vmatpush1.bf16.msra.mxu0 %v1210
    %1234 = vmatprep.subr.bf16.mxu0 0
    %1235 = vmatpush1.bf16.msra.mxu0 %v1211
    %1236 = vmatprep.subr.bf16.mxu0 0
    %1237 = vmatpush1.bf16.msra.mxu0 0
    %1238 = vmatprep.subr.bf16.mxu0 0
    %1239 = vmatpush1.bf16.msra.mxu0 0
    %1240 = vmatprep.subr.bf16.mxu0 0
    %1241 = vmatpush1.bf16.msra.mxu0 0
    %1242 = vmatprep.subr.bf16.mxu0 0
    %1243 = vmatpush1.bf16.msra.mxu0 0
    %1244 = vmatprep.subr.bf16.mxu0 0
    %1245 = vmatpush1.bf16.msra.mxu0 0
    %1246 = vmatprep.subr.bf16.mxu0 0
    %1247 = vmatpush1.bf16.msra.mxu0 0
    %1248 = vmatprep.subr.bf16.mxu0 0
    %1249 = vmatpush1.bf16.msra.mxu0 0
    %1250 = vmatprep.subr.bf16.mxu0 0
    %1251 = vmatpush1.bf16.msra.mxu0 0
    %1252 = vmatprep.mubr.bf16.mxu0 0
    %1253 = vmatmul.mubr.bf16.gmra.mrb[0].mxu0 %v1171
    %v1254 = vpop.f32.mrb[0].mxu0
    %v1255 = vadd.f32 0.0, %v1254
    %v1256 = vpop.f32.mrb[0].mxu0
    %v1257 = vpop.f32.mrb[0].mxu0
    %v1258 = vpop.f32.mrb[0].mxu0
    %1259 = vdwg.mxu0
    %v1260 = vrot.slane %v1255, 4
    %v1261 = vadd.f32 %v1255, %v1260
    %v1262 = vrot.slane %v1261, 2
    %v1263 = vadd.f32 %v1261, %v1262
    %v1264 = vrot.slane %v1263, 1
    %v1265 = vadd.f32 %v1263, %v1264
    %v1266 = vmul.f32 %v1265, 0.125
    %v1267 = vsub.f32 %v1255, %v1266
    %v1268 = vmul.f32 %v1267, %v1267
    %v1269 = vrot.slane %v1268, 4
    %v1270 = vadd.f32 %v1268, %v1269
    %v1271 = vrot.slane %v1270, 2
    %v1272 = vadd.f32 %v1270, %v1271
    %v1273 = vrot.slane %v1272, 1
    %v1274 = vadd.f32 %v1272, %v1273
    %v1275 = vmul.f32 %v1274, 0.125
    %v1276 = vadd.f32 %v1275, 1e-05
    %v1277 = vrsqrt.pop %v1276
    %v1278 = vmul.f32 %v33, %v1277
    %v1279 = vlaneseq
    %v1280 = vshrl.u32 %v1279, 7
    %v1281 = vsub.s32 2, %v1280
    %v1282 = vrot.slane %v1278, %v1281
    %v1283 = vmul.f32 %v1267, %v1282
    %v1284 = vlaneseq
    %v1285 = vshrl.u32 %v1284, 7
    %v1286 = vsub.s32 3, %v1285
    %v1287 = vrot.slane %v33, %v1286
    %v1288 = vadd.f32 %v1283, %v1287
    %v1289 = vrot.slane %v1137, 4
    %v1290 = vadd.f32 %v1137, %v1289
    %v1291 = vrot.slane %v1290, 2
    %v1292 = vadd.f32 %v1290, %v1291
    %v1293 = vrot.slane %v1292, 1
    %v1294 = vadd.f32 %v1292, %v1293
    %v1295 = vmul.f32 %v1294, 0.125
    %v1296 = vsub.f32 %v1137, %v1295
    %v1297 = vmul.f32 %v1296, %v1296
    %v1298 = vrot.slane %v1297, 4
    %v1299 = vadd.f32 %v1297, %v1298
    %v1300 = vrot.slane %v1299, 2
    %v1301 = vadd.f32 %v1299, %v1300
    %v1302 = vrot.slane %v1301, 1
    %v1303 = vadd.f32 %v1301, %v1302
    %v1304 = vmul.f32 %v1303, 0.125
    %v1305 = vadd.f32 %v1304, 1e-05
    %v1306 = vrsqrt.pop %v1305
    %v1307 = vmul.f32 %v33, %v1306
    %v1308 = vlaneseq
    %v1309 = vshrl.u32 %v1308, 7
    %v1310 = vsub.s32 4, %v1309
    %v1311 = vrot.slane %v1307, %v1310
    %v1312 = vmul.f32 %v1296, %v1311
    %v1313 = vlaneseq
    %v1314 = vshrl.u32 %v1313, 7
    %v1315 = vsub.s32 5, %v1314
    %v1316 = vrot.slane %v33, %v1315
    %v1317 = vadd.f32 %v1312, %v1316
    %v1318 = vadd.f32 %v1288, %v1317
    %v1319 = vmax.f32 %v1318, 0.0
    %v1320 = vpack.c.bf16 %v1319, %v1319
    %v1321 = vlaneseq
    %v1322 = vshrl.u32 %v1321, 7
    %v1323 = vsub.s32 6, %v1322
    %v1324 = vrot.slane %v33, %v1323
    %v1341 = vunpack.c.l.b16 %v162
    %v1342 = vunpack.c.l.b16 %v163
    %v1343 = vunpack.c.l.b16 %v164
    %v1344 = vunpack.c.l.b16 %v165
    %v1345 = vunpack.c.l.b16 %v166
    %v1346 = vunpack.c.l.b16 %v167
    %v1347 = vunpack.c.l.b16 %v168
    %v1348 = vunpack.c.l.b16 %v169
    %v1349 = vunpack.c.l.b16 %v170
    %v1350 = vunpack.c.l.b16 %v171
    %v1351 = vunpack.c.l.b16 %v172
    %v1352 = vunpack.c.l.b16 %v173
    %v1353 = vunpack.c.l.b16 %v174
    %v1354 = vunpack.c.l.b16 %v175
    %v1355 = vunpack.c.l.b16 %v176
    %v1356 = vunpack.c.l.b16 %v177
    %v1357 = vpack.c.b16 %v1342, %v1341
    %v1358 = vpack.c.b16 %v1344, %v1343
    %v1359 = vpack.c.b16 %v1346, %v1345
    %v1360 = vpack.c.b16 %v1348, %v1347
    %v1361 = vpack.c.b16 %v1350, %v1349
    %v1362 = vpack.c.b16 %v1352, %v1351
    %v1363 = vpack.c.b16 %v1354, %v1353
    %v1364 = vpack.c.b16 %v1356, %v1355
    %1373 = vmatprep.subr.bf16.mxu0 0
    %1374 = vmatpush1.bf16.msra.mxu0 %v1357
    %1375 = vmatprep.subr.bf16.mxu0 0
    %1376 = vmatpush1.bf16.msra.mxu0 %v1358
    %1377 = vmatprep.subr.bf16.mxu0 0
    %1378 = vmatpush1.bf16.msra.mxu0 %v1359
    %1379 = vmatprep.subr.bf16.mxu0 0
    %1380 = vmatpush1.bf16.msra.mxu0 %v1360
    %1381 = vmatprep.subr.bf16.mxu0 0
    %1382 = vmatpush1.bf16.msra.mxu0 %v1361
    %1383 = vmatprep.subr.bf16.mxu0 0
    %1384 = vmatpush1.bf16.msra.mxu0 %v1362
    %1385 = vmatprep.subr.bf16.mxu0 0
    %1386 = vmatpush1.bf16.msra.mxu0 %v1363
    %1387 = vmatprep.subr.bf16.mxu0 0
    %1388 = vmatpush1.bf16.msra.mxu0 %v1364
    %1389 = vmatprep.subr.bf16.mxu0 0
    %1390 = vmatpush1.bf16.msra.mxu0 0
    %1391 = vmatprep.subr.bf16.mxu0 0
    %1392 = vmatpush1.bf16.msra.mxu0 0
    %1393 = vmatprep.subr.bf16.mxu0 0
    %1394 = vmatpush1.bf16.msra.mxu0 0
    %1395 = vmatprep.subr.bf16.mxu0 0
    %1396 = vmatpush1.bf16.msra.mxu0 0
    %1397 = vmatprep.subr.bf16.mxu0 0
    %1398 = vmatpush1.bf16.msra.mxu0 0
    %1399 = vmatprep.subr.bf16.mxu0 0
    %1400 = vmatpush1.bf16.msra.mxu0 0
    %1401 = vmatprep.subr.bf16.mxu0 0
    %1402 = vmatpush1.bf16.msra.mxu0 0
    %1403 = vmatprep.subr.bf16.mxu0 0
    %1404 = vmatpush1.bf16.msra.mxu0 0
    %1405 = vmatprep.mubr.bf16.mxu0 0
    %1406 = vmatmul.mubr.bf16.gmra.mrb[0].mxu0 %v1320
    %v1407 = vpop.f32.mrb[0].mxu0
    %v1408 = vadd.f32 %v1324, %v1407
    %v1409 = vpop.f32.mrb[0].mxu0
    %v1410 = vpop.f32.mrb[0].mxu0
    %v1411 = vpop.f32.mrb[0].mxu0
    %1412 = vdwg.mxu0
    %1413 = vst [vmem:[#allocation5] sm:$0xff] %v1408
    // Predicated region
    $region18: #{resnet_tabular_forward.1} parent=1 // pred_check
      _
    $region19: #{resnet_tabular_forward.1} parent=1 // pred_check_branch
      %1415 = sbr.rel (0) target = $region21
    $region20: #{resnet_tabular_forward.1} parent=1 // pred_region
      %s1417 = ssub.s32 128, 128
      %1418 = vsyncadd [#allocation4], %s1417
      %s1420 = sshll.u32 [#allocation5], 4
      %s1421 = int_to_ptr.vmem [resolvable:$true] %s1420
      %1423 = dma.vmem_to_hbm [thread:$0]  %s1421, 128, %s3, [#allocation4]
    $region21: #{resnet_tabular_forward.1} parent=1 // pred_fallthru
      _
    // Predicated region
    $region22: #{resnet_tabular_forward.1} parent=1 // pred_check
      _
    $region23: #{resnet_tabular_forward.1} parent=1 // pred_check_branch
      %1425 = sbr.rel (0) target = $region25
    $region24: #{resnet_tabular_forward.1} parent=1 // pred_region
      %1426 = dma.done [#allocation4], 128
    $region25: #{resnet_tabular_forward.1} parent=1 // pred_fallthru
      _
    %1427 = vsyncpa [#allocation3], 1
    %1428 = vsyncpa [#allocation4], 1

</llo_original>
